<compile_context>
chip_gen: v6e
topology: v6e:2x2x1
jax: 0.10.0
libtpu: 0.0.40
codegen_flags: <defaults>
</compile_context>

<pallas_src>
import jax
import jax.numpy as jnp
from jax.experimental import pallas as pl
from jax.experimental.pallas import tpu as pltpu

_HIDDEN = 512
_LANE = 128


def _round_up(x, m):
    return (x + m - 1) // m * m


def _lut_gen_kernel(x_ref, w1_ref, b1_ref, w2_ref, b2_ref, o_ref):
    # Layer 1: Linear(K -> 512) on the MXU (bf16 operands, f32 accumulate).
    h = jnp.dot(x_ref[...], w1_ref[...], preferred_element_type=jnp.float32)
    # Bias add + sigmoid in f32 (VPU/EUP; v5e has no bf16 elementwise units).
    h = jax.nn.sigmoid(h + b1_ref[...])
    # Layer 2: Linear(512 -> 128 padded); only the matmul operand is bf16.
    y = jnp.dot(h.astype(jnp.bfloat16), w2_ref[...],
                preferred_element_type=jnp.float32)
    y = jax.nn.sigmoid(y + b2_ref[...]) * 255.0
    o_ref[...] = y.astype(o_ref.dtype)


def lut_generator_hist_forward(x, w1, b1, w2, b2, lut_points):
    """x: (B, n_channels, 256) f32, w1: (256*C, 512), w2: (512, 3*lut_points).

    Returns lut: (B, 3, lut_points) f32 (already scaled by 255).
    """
    B = x.shape[0]
    K = x.shape[1] * x.shape[2]                 # 256 * n_channels (lane aligned)
    out_dim = lut_points * 3                    # 96 for lut_points=32
    n_pad = _round_up(out_dim, _LANE)           # lane-dense output: 96 -> 128

    # --- wrapper-side glue: flatten (nn.Flatten), pad batch, cast to bf16 ---
    x_flat = x.reshape(B, K)                    # row-major, same as torch
    tb = min(256, _round_up(B, 16))             # bf16 sublane tile = 16 rows
    b_pad = _round_up(B, tb)
    if b_pad != B:
        x_flat = jnp.pad(x_flat, ((0, b_pad - B), (0, 0)))
    x_bf = x_flat.astype(jnp.bfloat16)
    w1_bf = w1.astype(jnp.bfloat16)
    w2_bf = jnp.pad(w2, ((0, 0), (0, n_pad - out_dim))).astype(jnp.bfloat16)
    b1_r = b1.reshape(1, _HIDDEN).astype(jnp.float32)
    b2_r = jnp.pad(b2, (0, n_pad - out_dim)).reshape(1, n_pad).astype(jnp.float32)

    cost = pl.CostEstimate(
        flops=2 * b_pad * (K * _HIDDEN + _HIDDEN * n_pad),
        transcendentals=b_pad * (_HIDDEN + n_pad),
        bytes_accessed=int(x_bf.size * 2 + w1_bf.size * 2 + w2_bf.size * 2
                           + b1_r.size * 4 + b2_r.size * 4 + b_pad * n_pad * 4),
    )

    lut_flat = pl.pallas_call(
        _lut_gen_kernel,
        out_shape=jax.ShapeDtypeStruct((b_pad, n_pad), jnp.float32),
        grid_spec=pltpu.PrefetchScalarGridSpec(
            num_scalar_prefetch=0,
            grid=(b_pad // tb,),
            in_specs=[
                pl.BlockSpec((tb, K), lambda i: (i, 0)),        # batch-tiled x
                pl.BlockSpec((K, _HIDDEN), lambda i: (0, 0)),   # resident w1
                pl.BlockSpec((1, _HIDDEN), lambda i: (0, 0)),   # resident b1
                pl.BlockSpec((_HIDDEN, n_pad), lambda i: (0, 0)),  # resident w2
                pl.BlockSpec((1, n_pad), lambda i: (0, 0)),     # resident b2
            ],
            out_specs=pl.BlockSpec((tb, n_pad), lambda i: (i, 0)),
        ),
        compiler_params=pltpu.CompilerParams(
            dimension_semantics=("parallel",)),
        cost_estimate=cost,
    )(x_bf, w1_bf, b1_r, w2_bf, b2_r)

    # Drop batch + lane padding, then view(-1, 3, lut_points); *255 done in-kernel.
    return lut_flat[:B, :out_dim].reshape(-1, 3, lut_points)


def init_params(key, n_channels, lut_points=32):
    """Deterministic init mirroring weights_init: W ~ N(0, 0.02), b = 0."""
    in1 = 256 * n_channels
    k1, k2 = jax.random.split(key)
    # PyTorch Linear stores weight as (out, in); pre-transpose to (in, out).
    w1 = (0.02 * jax.random.normal(k1, (512, in1), jnp.float32)).T
    b1 = jnp.zeros((512,), jnp.float32)
    w2 = (0.02 * jax.random.normal(k2, (lut_points * 3, 512), jnp.float32)).T
    b2 = jnp.zeros((lut_points * 3,), jnp.float32)
    return w1, b1, w2, b2


if __name__ == "__main__":
    B = 2
    n_channels = 3
    lut_points = 32

    key = jax.random.PRNGKey(0)
    k_x, k_p = jax.random.split(key)

    # Synthetic per-channel histogram input: (B, n_channels, 256) in [0, 1)
    x = jax.random.uniform(k_x, (B, n_channels, 256), jnp.float32)
    w1, b1, w2, b2 = init_params(k_p, n_channels, lut_points)

    lut = lut_generator_hist_forward(x, w1, b1, w2, b2, lut_points)
    lut = jax.block_until_ready(lut)

    assert lut.shape == (B, 3, lut_points), lut.shape
    assert lut.dtype == jnp.float32
    assert bool(jnp.all(jnp.isfinite(lut)))
    assert bool(jnp.all((lut >= 0.0) & (lut <= 255.0)))

    # Reference 1: exact f32 math of the PyTorch module (loose tol: bf16 weights).
    ref32 = jax.nn.sigmoid(x.reshape(B, -1) @ w1 + b1)
    ref32 = jax.nn.sigmoid(ref32 @ w2 + b2) * 255.0
    ref32 = ref32.reshape(-1, 3, lut_points)
    assert jnp.allclose(lut, ref32, atol=1.0, rtol=2e-2), (
        float(jnp.max(jnp.abs(lut - ref32))))

    # Reference 2: same bf16-operand / f32-accumulate math as the kernel (tight).
    xb = x.reshape(B, -1).astype(jnp.bfloat16)
    hb = jax.nn.sigmoid(
        jnp.dot(xb, w1.astype(jnp.bfloat16),
                preferred_element_type=jnp.float32) + b1)
    yb = jax.nn.sigmoid(
        jnp.dot(hb.astype(jnp.bfloat16), w2.astype(jnp.bfloat16),
                preferred_element_type=jnp.float32) + b2) * 255.0
    refb = yb.reshape(-1, 3, lut_points)
    assert jnp.allclose(lut, refb, atol=5e-2, rtol=1e-3), (
        float(jnp.max(jnp.abs(lut - refb))))

    print("KERNEL_OK")
</pallas_src>

<mosaic_0001>
module attributes {stable_mosaic.version = 11 : i64} {
  func.func @_lut_gen_kernel(%arg0: i32, %arg1: memref<16x768xbf16, #tpu.memory_space<vmem>>, %arg2: memref<768x512xbf16, #tpu.memory_space<vmem>>, %arg3: memref<1x512xf32, #tpu.memory_space<vmem>>, %arg4: memref<512x128xbf16, #tpu.memory_space<vmem>>, %arg5: memref<1x128xf32, #tpu.memory_space<vmem>>, %arg6: memref<16x128xf32, #tpu.memory_space<vmem>>) attributes {dimension_semantics = [#tpu.dimension_semantics<parallel>], iteration_bounds = array<i64: 1>, scalar_prefetch = 0 : i64, scratch_operands = 0 : i64, tpu.core_type = #tpu.core_type<tc>, window_params = [{transform_indices = @transform_0, window_bounds = array<i64: 16, 768>}, {pipeline_mode = #tpu.pipeline_mode<synchronous>, transform_indices = @transform_1, window_bounds = array<i64: 768, 512>}, {pipeline_mode = #tpu.pipeline_mode<synchronous>, transform_indices = @transform_2, window_bounds = array<i64: 1, 512>}, {pipeline_mode = #tpu.pipeline_mode<synchronous>, transform_indices = @transform_3, window_bounds = array<i64: 512, 128>}, {pipeline_mode = #tpu.pipeline_mode<synchronous>, transform_indices = @transform_4, window_bounds = array<i64: 1, 128>}, {transform_indices = @transform_5, window_bounds = array<i64: 16, 128>}]} {
    %c0 = arith.constant 0 : index
    %c0_0 = arith.constant 0 : index
    %0 = vector.load %arg1[%c0, %c0_0] : memref<16x768xbf16, #tpu.memory_space<vmem>>, vector<16x768xbf16>
    %c0_1 = arith.constant 0 : index
    %c0_2 = arith.constant 0 : index
    %1 = vector.load %arg2[%c0_1, %c0_2] : memref<768x512xbf16, #tpu.memory_space<vmem>>, vector<768x512xbf16>
    %cst = arith.constant dense<0.000000e+00> : vector<16x512xf32>
    %2 = tpu.matmul %0, %1, %cst {dimension_numbers = #tpu.dot_dimension_numbers<[1], [0], [0], [1], [0, 0, 1, 1], [], []>} : vector<16x768xbf16>, vector<768x512xbf16>, vector<16x512xf32> -> vector<16x512xf32>
    %c0_3 = arith.constant 0 : index
    %c0_4 = arith.constant 0 : index
    %3 = vector.load %arg3[%c0_3, %c0_4] : memref<1x512xf32, #tpu.memory_space<vmem>>, vector<1x512xf32>
    %4 = vector.broadcast %3 : vector<1x512xf32> to vector<16x512xf32>
    %5 = arith.addf %2, %4 : vector<16x512xf32>
    %6 = arith.negf %5 : vector<16x512xf32>
    %7 = math.exp %6 : vector<16x512xf32>
    %cst_5 = arith.constant 1.000000e+00 : f32
    %8 = vector.broadcast %cst_5 : f32 to vector<16x512xf32>
    %9 = arith.addf %8, %7 : vector<16x512xf32>
    %10 = arith.divf %8, %9 : vector<16x512xf32>
    %11 = arith.truncf %10 : vector<16x512xf32> to vector<16x512xbf16>
    %c0_6 = arith.constant 0 : index
    %c0_7 = arith.constant 0 : index
    %12 = vector.load %arg4[%c0_6, %c0_7] : memref<512x128xbf16, #tpu.memory_space<vmem>>, vector<512x128xbf16>
    %cst_8 = arith.constant dense<0.000000e+00> : vector<16x128xf32>
    %13 = tpu.matmul %11, %12, %cst_8 {dimension_numbers = #tpu.dot_dimension_numbers<[1], [0], [0], [1], [0, 0, 1, 1], [], []>} : vector<16x512xbf16>, vector<512x128xbf16>, vector<16x128xf32> -> vector<16x128xf32>
    %c0_9 = arith.constant 0 : index
    %c0_10 = arith.constant 0 : index
    %14 = vector.load %arg5[%c0_9, %c0_10] : memref<1x128xf32, #tpu.memory_space<vmem>>, vector<1x128xf32>
    %15 = vector.broadcast %14 : vector<1x128xf32> to vector<16x128xf32>
    %16 = arith.addf %13, %15 : vector<16x128xf32>
    %17 = arith.negf %16 : vector<16x128xf32>
    %18 = math.exp %17 : vector<16x128xf32>
    %cst_11 = arith.constant 1.000000e+00 : f32
    %19 = vector.broadcast %cst_11 : f32 to vector<16x128xf32>
    %20 = arith.addf %19, %18 : vector<16x128xf32>
    %21 = arith.divf %19, %20 : vector<16x128xf32>
    %cst_12 = arith.constant 2.550000e+02 : f32
    %22 = vector.broadcast %cst_12 : f32 to vector<16x128xf32>
    %23 = arith.mulf %21, %22 : vector<16x128xf32>
    %c0_13 = arith.constant 0 : index
    %c0_14 = arith.constant 0 : index
    %24 = vector.load %arg6[%c0_13, %c0_14] : memref<16x128xf32, #tpu.memory_space<vmem>>, vector<16x128xf32>
    tpu.vector_store %arg6[%c0_13, %c0_14], %23 {strides = array<i32>} : memref<16x128xf32, #tpu.memory_space<vmem>>, vector<16x128xf32>,
    return
  }
  func.func @transform_0(%arg0: i32) -> (i32, i32) {
    %c0_i32 = arith.constant 0 : i32
    %c0_i32_0 = arith.constant 0 : i32
    return %arg0, %c0_i32 : i32, i32
  }
  func.func @transform_1(%arg0: i32) -> (i32, i32) {
    %c0_i32 = arith.constant 0 : i32
    %c0_i32_0 = arith.constant 0 : i32
    %c0_i32_1 = arith.constant 0 : i32
    return %c0_i32, %c0_i32_0 : i32, i32
  }
  func.func @transform_2(%arg0: i32) -> (i32, i32) {
    %c0_i32 = arith.constant 0 : i32
    %c0_i32_0 = arith.constant 0 : i32
    %c0_i32_1 = arith.constant 0 : i32
    return %c0_i32, %c0_i32_0 : i32, i32
  }
  func.func @transform_3(%arg0: i32) -> (i32, i32) {
    %c0_i32 = arith.constant 0 : i32
    %c0_i32_0 = arith.constant 0 : i32
    %c0_i32_1 = arith.constant 0 : i32
    return %c0_i32, %c0_i32_0 : i32, i32
  }
  func.func @transform_4(%arg0: i32) -> (i32, i32) {
    %c0_i32 = arith.constant 0 : i32
    %c0_i32_0 = arith.constant 0 : i32
    %c0_i32_1 = arith.constant 0 : i32
    return %c0_i32, %c0_i32_0 : i32, i32
  }
  func.func @transform_5(%arg0: i32) -> (i32, i32) {
    %c0_i32 = arith.constant 0 : i32
    %c0_i32_0 = arith.constant 0 : i32
    return %arg0, %c0_i32 : i32, i32
  }
}

</mosaic_0001>

<llo_original>
// kernel: tpu_custom_call.1
$region0: #{tpu_custom_call.1}
  #allocation0 [shape = 'u32[]', space=smem, size = 0x4, offset = 0x4, fixed_abs, tag = 'smem constant byte address 0x4 - core index']
  #allocation1 [shape = 'u32[144,128]{1,0:T(1,128)}', space=vmem, size = 0x12000, scoped, tag = 'internal scratch']
  %s0 = inlined_call_operand.hbm [shape: bf16[16,768], index: 0, kind: input, shape index: {}]
  %s1 = inlined_call_operand.hbm [shape: bf16[768,512], index: 1, kind: input, shape index: {}]
  %s2 = inlined_call_operand.hbm [shape: f32[1,512], index: 2, kind: input, shape index: {}]
  %s3 = inlined_call_operand.hbm [shape: bf16[512,128], index: 3, kind: input, shape index: {}]
  %s4 = inlined_call_operand.vmem [shape: f32[1,128], index: 4, kind: input, shape index: {}]
  %s5 = inlined_call_operand.hbm [shape: f32[16,128], index: 5, kind: output, shape index: {}]
  %s6 = sld [smem:[#allocation0]]
  $region46: #{tpu_custom_call.1} parent=0
    _
  %s8 = ssub.s32 1, %s6
  %s9 = scalar_select 0, %s8, %s6
  $region1: #{tpu_custom_call.1} parent=0
    #allocation2 [shape = 'u8[24576]{0}', space=vmem, size = 0x6000, scoped, tag = 'input window, operand 0, single buffered']
    #allocation3 [shape = 's32[1]{0}', space=sflag, size = 0x4, scoped, tag = 'scoped memory for tpu_custom_call.1']
    #allocation4 [shape = 's32[1]{0}', space=sflag, size = 0x4, scoped, tag = 'scoped memory for tpu_custom_call.1']
    #allocation5 [shape = 'u8[786432]{0}', space=vmem, size = 0xc0000, scoped, tag = 'input window, operand 1, single buffered']
    #allocation6 [shape = 's32[1]{0}', space=sflag, size = 0x4, scoped, tag = 'scoped memory for tpu_custom_call.1']
    #allocation7 [shape = 'u8[2048]{0}', space=vmem, size = 0x800, scoped, tag = 'input window, operand 2, single buffered']
    #allocation8 [shape = 'u8[131072]{0}', space=vmem, size = 0x20000, scoped, tag = 'input window, operand 3, single buffered']
    #allocation9 [shape = 's32[1]{0}', space=sflag, size = 0x4, scoped, tag = 'scoped memory for tpu_custom_call.1']
    #allocation10 [shape = 'u8[8192]{0}', space=vmem, size = 0x2000, scoped, tag = 'output window, operand 0, single buffered']
    %10 = vsyncpa [#allocation3], 0
    %11 = vsyncpa [#allocation6], 0
    %12 = vsyncpa [#allocation9], 0
    %13 = vsyncpa [#allocation4], 0
    // Predicated region
    $region2: #{tpu_custom_call.1} parent=1 // pred_check
      _
    $region3: #{tpu_custom_call.1} parent=1 // pred_check_branch
      %15 = sbr.rel (0) target = $region5
    $region4: #{tpu_custom_call.1} parent=1 // pred_region
      %s17 = ssub.s32 768, 768
      %18 = vsyncadd [#allocation3], %s17
      %s19 = sshll.u32 [#allocation2], 4
      %s20 = int_to_ptr.vmem [resolvable:$true] %s19
      %25 = dma.hbm_to_vmem [thread:$0]  %s0, 768, %s20, [#allocation3], 384, 384, 24
    $region5: #{tpu_custom_call.1} parent=1 // pred_fallthru
      _
    // Predicated region
    $region6: #{tpu_custom_call.1} parent=1 // pred_check
      _
    $region7: #{tpu_custom_call.1} parent=1 // pred_check_branch
      %27 = sbr.rel (0) target = $region9
    $region8: #{tpu_custom_call.1} parent=1 // pred_region
      %s29 = ssub.s32 24576, 24576
      %30 = vsyncadd [#allocation6], %s29
      %s31 = sshll.u32 [#allocation5], 4
      %s32 = int_to_ptr.vmem [resolvable:$true] %s31
      %37 = dma.hbm_to_vmem [thread:$0]  %s1, 24576, %s32, [#allocation6], 256, 256, 16
    $region9: #{tpu_custom_call.1} parent=1 // pred_fallthru
      _
    // Predicated region
    $region10: #{tpu_custom_call.1} parent=1 // pred_check
      _
    $region11: #{tpu_custom_call.1} parent=1 // pred_check_branch
      %39 = sbr.rel (0) target = $region13
    $region12: #{tpu_custom_call.1} parent=1 // pred_region
      %s41 = ssub.s32 64, 64
      %42 = vsyncadd [#allocation6], %s41
      %s44 = sshll.u32 [#allocation7], 4
      %s45 = int_to_ptr.vmem [resolvable:$true] %s44
      %47 = dma.hbm_to_vmem [thread:$0]  %s2, 64, %s45, [#allocation6]
    $region13: #{tpu_custom_call.1} parent=1 // pred_fallthru
      _
    // Predicated region
    $region14: #{tpu_custom_call.1} parent=1 // pred_check
      _
    $region15: #{tpu_custom_call.1} parent=1 // pred_check_branch
      %49 = sbr.rel (0) target = $region17
    $region16: #{tpu_custom_call.1} parent=1 // pred_region
      %s51 = ssub.s32 4096, 4096
      %52 = vsyncadd [#allocation9], %s51
      %s53 = sshll.u32 [#allocation8], 4
      %s54 = int_to_ptr.vmem [resolvable:$true] %s53
      %59 = dma.hbm_to_vmem [thread:$0]  %s3, 4096, %s54, [#allocation9], 64, 64, 4
    $region17: #{tpu_custom_call.1} parent=1 // pred_fallthru
      _
    // Predicated region
    $region18: #{tpu_custom_call.1} parent=1 // pred_check
      _
    $region19: #{tpu_custom_call.1} parent=1 // pred_check_branch
      %61 = sbr.rel (0) target = $region21
    $region20: #{tpu_custom_call.1} parent=1 // pred_region
      _
    $region21: #{tpu_custom_call.1} parent=1 // pred_fallthru
      _
    // Predicated region
    $region22: #{tpu_custom_call.1} parent=1 // pred_check
      _
    $region23: #{tpu_custom_call.1} parent=1 // pred_check_branch
      %63 = sbr.rel (0) target = $region25
    $region24: #{tpu_custom_call.1} parent=1 // pred_region
      %64 = dma.done [#allocation3], 768
    $region25: #{tpu_custom_call.1} parent=1 // pred_fallthru
      _
    // Predicated region
    $region26: #{tpu_custom_call.1} parent=1 // pred_check
      _
    $region27: #{tpu_custom_call.1} parent=1 // pred_check_branch
      %66 = sbr.rel (0) target = $region29
    $region28: #{tpu_custom_call.1} parent=1 // pred_region
      %67 = dma.done [#allocation6], 24576
    $region29: #{tpu_custom_call.1} parent=1 // pred_fallthru
      _
    // Predicated region
    $region30: #{tpu_custom_call.1} parent=1 // pred_check
      _
    $region31: #{tpu_custom_call.1} parent=1 // pred_check_branch
      %69 = sbr.rel (0) target = $region33
    $region32: #{tpu_custom_call.1} parent=1 // pred_region
      %70 = dma.done [#allocation6], 64
    $region33: #{tpu_custom_call.1} parent=1 // pred_fallthru
      _
    // Predicated region
    $region34: #{tpu_custom_call.1} parent=1 // pred_check
      _
    $region35: #{tpu_custom_call.1} parent=1 // pred_check_branch
      %72 = sbr.rel (0) target = $region37
    $region36: #{tpu_custom_call.1} parent=1 // pred_region
      %73 = dma.done [#allocation9], 4096
    $region37: #{tpu_custom_call.1} parent=1 // pred_fallthru
      _
    %v75 = vld [vmem:[#allocation2] sm:$0xff]
    %v76 = vld [vmem:[#allocation2 + $0x8] sm:$0xff]
    %v77 = vld [vmem:[#allocation2 + $0x10] sm:$0xff]
    %v78 = vld [vmem:[#allocation2 + $0x18] sm:$0xff]
    %v79 = vld [vmem:[#allocation2 + $0x20] sm:$0xff]
    %v80 = vld [vmem:[#allocation2 + $0x28] sm:$0xff]
    %v81 = vld [vmem:[#allocation5] sm:$0xff]
    %v82 = vld [vmem:[#allocation5 + $0x8] sm:$0xff]
    %v83 = vld [vmem:[#allocation5 + $0x10] sm:$0xff]
    %v84 = vld [vmem:[#allocation5 + $0x18] sm:$0xff]
    %v85 = vld [vmem:[#allocation5 + $0x20] sm:$0xff]
    %v86 = vld [vmem:[#allocation5 + $0x28] sm:$0xff]
    %v87 = vld [vmem:[#allocation5 + $0x30] sm:$0xff]
    %v88 = vld [vmem:[#allocation5 + $0x38] sm:$0xff]
    %v89 = vld [vmem:[#allocation5 + $0x40] sm:$0xff]
    %v90 = vld [vmem:[#allocation5 + $0x48] sm:$0xff]
    %v91 = vld [vmem:[#allocation5 + $0x50] sm:$0xff]
    %v92 = vld [vmem:[#allocation5 + $0x58] sm:$0xff]
    %v93 = vld [vmem:[#allocation5 + $0x60] sm:$0xff]
    %v94 = vld [vmem:[#allocation5 + $0x68] sm:$0xff]
    %v95 = vld [vmem:[#allocation5 + $0x70] sm:$0xff]
    %v96 = vld [vmem:[#allocation5 + $0x78] sm:$0xff]
    %v97 = vld [vmem:[#allocation5 + $0x80] sm:$0xff]
    %v98 = vld [vmem:[#allocation5 + $0x88] sm:$0xff]
    %v99 = vld [vmem:[#allocation5 + $0x90] sm:$0xff]
    %v100 = vld [vmem:[#allocation5 + $0x98] sm:$0xff]
    %v101 = vld [vmem:[#allocation5 + $0xa0] sm:$0xff]
    %v102 = vld [vmem:[#allocation5 + $0xa8] sm:$0xff]
    %v103 = vld [vmem:[#allocation5 + $0xb0] sm:$0xff]
    %v104 = vld [vmem:[#allocation5 + $0xb8] sm:$0xff]
    %v105 = vld [vmem:[#allocation5 + $0xc0] sm:$0xff]
    %v106 = vld [vmem:[#allocation5 + $0xc8] sm:$0xff]
    %v107 = vld [vmem:[#allocation5 + $0xd0] sm:$0xff]
    %v108 = vld [vmem:[#allocation5 + $0xd8] sm:$0xff]
    %v109 = vld [vmem:[#allocation5 + $0xe0] sm:$0xff]
    %v110 = vld [vmem:[#allocation5 + $0xe8] sm:$0xff]
    %v111 = vld [vmem:[#allocation5 + $0xf0] sm:$0xff]
    %v112 = vld [vmem:[#allocation5 + $0xf8] sm:$0xff]
    %v113 = vld [vmem:[#allocation5 + $0x100] sm:$0xff]
    %v114 = vld [vmem:[#allocation5 + $0x108] sm:$0xff]
    %v115 = vld [vmem:[#allocation5 + $0x110] sm:$0xff]
    %v116 = vld [vmem:[#allocation5 + $0x118] sm:$0xff]
    %v117 = vld [vmem:[#allocation5 + $0x120] sm:$0xff]
    %v118 = vld [vmem:[#allocation5 + $0x128] sm:$0xff]
    %v119 = vld [vmem:[#allocation5 + $0x130] sm:$0xff]
    %v120 = vld [vmem:[#allocation5 + $0x138] sm:$0xff]
    %v121 = vld [vmem:[#allocation5 + $0x140] sm:$0xff]
    %v122 = vld [vmem:[#allocation5 + $0x148] sm:$0xff]
    %v123 = vld [vmem:[#allocation5 + $0x150] sm:$0xff]
    %v124 = vld [vmem:[#allocation5 + $0x158] sm:$0xff]
    %v125 = vld [vmem:[#allocation5 + $0x160] sm:$0xff]
    %v126 = vld [vmem:[#allocation5 + $0x168] sm:$0xff]
    %v127 = vld [vmem:[#allocation5 + $0x170] sm:$0xff]
    %v128 = vld [vmem:[#allocation5 + $0x178] sm:$0xff]
    %v129 = vld [vmem:[#allocation5 + $0x180] sm:$0xff]
    %v130 = vld [vmem:[#allocation5 + $0x188] sm:$0xff]
    %v131 = vld [vmem:[#allocation5 + $0x190] sm:$0xff]
    %v132 = vld [vmem:[#allocation5 + $0x198] sm:$0xff]
    %v133 = vld [vmem:[#allocation5 + $0x1a0] sm:$0xff]
    %v134 = vld [vmem:[#allocation5 + $0x1a8] sm:$0xff]
    %v135 = vld [vmem:[#allocation5 + $0x1b0] sm:$0xff]
    %v136 = vld [vmem:[#allocation5 + $0x1b8] sm:$0xff]
    %v137 = vld [vmem:[#allocation5 + $0x1c0] sm:$0xff]
    %v138 = vld [vmem:[#allocation5 + $0x1c8] sm:$0xff]
    %v139 = vld [vmem:[#allocation5 + $0x1d0] sm:$0xff]
    %v140 = vld [vmem:[#allocation5 + $0x1d8] sm:$0xff]
    %v141 = vld [vmem:[#allocation5 + $0x1e0] sm:$0xff]
    %v142 = vld [vmem:[#allocation5 + $0x1e8] sm:$0xff]
    %v143 = vld [vmem:[#allocation5 + $0x1f0] sm:$0xff]
    %v144 = vld [vmem:[#allocation5 + $0x1f8] sm:$0xff]
    %v145 = vld [vmem:[#allocation5 + $0x200] sm:$0xff]
    %v146 = vld [vmem:[#allocation5 + $0x208] sm:$0xff]
    %v147 = vld [vmem:[#allocation5 + $0x210] sm:$0xff]
    %v148 = vld [vmem:[#allocation5 + $0x218] sm:$0xff]
    %v149 = vld [vmem:[#allocation5 + $0x220] sm:$0xff]
    %v150 = vld [vmem:[#allocation5 + $0x228] sm:$0xff]
    %v151 = vld [vmem:[#allocation5 + $0x230] sm:$0xff]
    %v152 = vld [vmem:[#allocation5 + $0x238] sm:$0xff]
    %v153 = vld [vmem:[#allocation5 + $0x240] sm:$0xff]
    %v154 = vld [vmem:[#allocation5 + $0x248] sm:$0xff]
    %v155 = vld [vmem:[#allocation5 + $0x250] sm:$0xff]
    %v156 = vld [vmem:[#allocation5 + $0x258] sm:$0xff]
    %v157 = vld [vmem:[#allocation5 + $0x260] sm:$0xff]
    %v158 = vld [vmem:[#allocation5 + $0x268] sm:$0xff]
    %v159 = vld [vmem:[#allocation5 + $0x270] sm:$0xff]
    %v160 = vld [vmem:[#allocation5 + $0x278] sm:$0xff]
    %v161 = vld [vmem:[#allocation5 + $0x280] sm:$0xff]
    %v162 = vld [vmem:[#allocation5 + $0x288] sm:$0xff]
    %v163 = vld [vmem:[#allocation5 + $0x290] sm:$0xff]
    %v164 = vld [vmem:[#allocation5 + $0x298] sm:$0xff]
    %v165 = vld [vmem:[#allocation5 + $0x2a0] sm:$0xff]
    %v166 = vld [vmem:[#allocation5 + $0x2a8] sm:$0xff]
    %v167 = vld [vmem:[#allocation5 + $0x2b0] sm:$0xff]
    %v168 = vld [vmem:[#allocation5 + $0x2b8] sm:$0xff]
    %v169 = vld [vmem:[#allocation5 + $0x2c0] sm:$0xff]
    %v170 = vld [vmem:[#allocation5 + $0x2c8] sm:$0xff]
    %v171 = vld [vmem:[#allocation5 + $0x2d0] sm:$0xff]
    %v172 = vld [vmem:[#allocation5 + $0x2d8] sm:$0xff]
    %v173 = vld [vmem:[#allocation5 + $0x2e0] sm:$0xff]
    %v174 = vld [vmem:[#allocation5 + $0x2e8] sm:$0xff]
    %v175 = vld [vmem:[#allocation5 + $0x2f0] sm:$0xff]
    %v176 = vld [vmem:[#allocation5 + $0x2f8] sm:$0xff]
    %v177 = vld [vmem:[#allocation5 + $0x300] sm:$0xff]
    %v178 = vld [vmem:[#allocation5 + $0x308] sm:$0xff]
    %v179 = vld [vmem:[#allocation5 + $0x310] sm:$0xff]
    %v180 = vld [vmem:[#allocation5 + $0x318] sm:$0xff]
    %v181 = vld [vmem:[#allocation5 + $0x320] sm:$0xff]
    %v182 = vld [vmem:[#allocation5 + $0x328] sm:$0xff]
    %v183 = vld [vmem:[#allocation5 + $0x330] sm:$0xff]
    %v184 = vld [vmem:[#allocation5 + $0x338] sm:$0xff]
    %v185 = vld [vmem:[#allocation5 + $0x340] sm:$0xff]
    %v186 = vld [vmem:[#allocation5 + $0x348] sm:$0xff]
    %v187 = vld [vmem:[#allocation5 + $0x350] sm:$0xff]
    %v188 = vld [vmem:[#allocation5 + $0x358] sm:$0xff]
    %v189 = vld [vmem:[#allocation5 + $0x360] sm:$0xff]
    %v190 = vld [vmem:[#allocation5 + $0x368] sm:$0xff]
    %v191 = vld [vmem:[#allocation5 + $0x370] sm:$0xff]
    %v192 = vld [vmem:[#allocation5 + $0x378] sm:$0xff]
    %v193 = vld [vmem:[#allocation5 + $0x380] sm:$0xff]
    %v194 = vld [vmem:[#allocation5 + $0x388] sm:$0xff]
    %v195 = vld [vmem:[#allocation5 + $0x390] sm:$0xff]
    %v196 = vld [vmem:[#allocation5 + $0x398] sm:$0xff]
    %v197 = vld [vmem:[#allocation5 + $0x3a0] sm:$0xff]
    %v198 = vld [vmem:[#allocation5 + $0x3a8] sm:$0xff]
    %v199 = vld [vmem:[#allocation5 + $0x3b0] sm:$0xff]
    %v200 = vld [vmem:[#allocation5 + $0x3b8] sm:$0xff]
    %v201 = vld [vmem:[#allocation5 + $0x3c0] sm:$0xff]
    %v202 = vld [vmem:[#allocation5 + $0x3c8] sm:$0xff]
    %v203 = vld [vmem:[#allocation5 + $0x3d0] sm:$0xff]
    %v204 = vld [vmem:[#allocation5 + $0x3d8] sm:$0xff]
    %v205 = vld [vmem:[#allocation5 + $0x3e0] sm:$0xff]
    %v206 = vld [vmem:[#allocation5 + $0x3e8] sm:$0xff]
    %v207 = vld [vmem:[#allocation5 + $0x3f0] sm:$0xff]
    %v208 = vld [vmem:[#allocation5 + $0x3f8] sm:$0xff]
    %v209 = vld [vmem:[#allocation5 + $0x400] sm:$0xff]
    %v210 = vld [vmem:[#allocation5 + $0x408] sm:$0xff]
    %v211 = vld [vmem:[#allocation5 + $0x410] sm:$0xff]
    %v212 = vld [vmem:[#allocation5 + $0x418] sm:$0xff]
    %v213 = vld [vmem:[#allocation5 + $0x420] sm:$0xff]
    %v214 = vld [vmem:[#allocation5 + $0x428] sm:$0xff]
    %v215 = vld [vmem:[#allocation5 + $0x430] sm:$0xff]
    %v216 = vld [vmem:[#allocation5 + $0x438] sm:$0xff]
    %v217 = vld [vmem:[#allocation5 + $0x440] sm:$0xff]
    %v218 = vld [vmem:[#allocation5 + $0x448] sm:$0xff]
    %v219 = vld [vmem:[#allocation5 + $0x450] sm:$0xff]
    %v220 = vld [vmem:[#allocation5 + $0x458] sm:$0xff]
    %v221 = vld [vmem:[#allocation5 + $0x460] sm:$0xff]
    %v222 = vld [vmem:[#allocation5 + $0x468] sm:$0xff]
    %v223 = vld [vmem:[#allocation5 + $0x470] sm:$0xff]
    %v224 = vld [vmem:[#allocation5 + $0x478] sm:$0xff]
    %v225 = vld [vmem:[#allocation5 + $0x480] sm:$0xff]
    %v226 = vld [vmem:[#allocation5 + $0x488] sm:$0xff]
    %v227 = vld [vmem:[#allocation5 + $0x490] sm:$0xff]
    %v228 = vld [vmem:[#allocation5 + $0x498] sm:$0xff]
    %v229 = vld [vmem:[#allocation5 + $0x4a0] sm:$0xff]
    %v230 = vld [vmem:[#allocation5 + $0x4a8] sm:$0xff]
    %v231 = vld [vmem:[#allocation5 + $0x4b0] sm:$0xff]
    %v232 = vld [vmem:[#allocation5 + $0x4b8] sm:$0xff]
    %v233 = vld [vmem:[#allocation5 + $0x4c0] sm:$0xff]
    %v234 = vld [vmem:[#allocation5 + $0x4c8] sm:$0xff]
    %v235 = vld [vmem:[#allocation5 + $0x4d0] sm:$0xff]
    %v236 = vld [vmem:[#allocation5 + $0x4d8] sm:$0xff]
    %v237 = vld [vmem:[#allocation5 + $0x4e0] sm:$0xff]
    %v238 = vld [vmem:[#allocation5 + $0x4e8] sm:$0xff]
    %v239 = vld [vmem:[#allocation5 + $0x4f0] sm:$0xff]
    %v240 = vld [vmem:[#allocation5 + $0x4f8] sm:$0xff]
    %v241 = vld [vmem:[#allocation5 + $0x500] sm:$0xff]
    %v242 = vld [vmem:[#allocation5 + $0x508] sm:$0xff]
    %v243 = vld [vmem:[#allocation5 + $0x510] sm:$0xff]
    %v244 = vld [vmem:[#allocation5 + $0x518] sm:$0xff]
    %v245 = vld [vmem:[#allocation5 + $0x520] sm:$0xff]
    %v246 = vld [vmem:[#allocation5 + $0x528] sm:$0xff]
    %v247 = vld [vmem:[#allocation5 + $0x530] sm:$0xff]
    %v248 = vld [vmem:[#allocation5 + $0x538] sm:$0xff]
    %v249 = vld [vmem:[#allocation5 + $0x540] sm:$0xff]
    %v250 = vld [vmem:[#allocation5 + $0x548] sm:$0xff]
    %v251 = vld [vmem:[#allocation5 + $0x550] sm:$0xff]
    %v252 = vld [vmem:[#allocation5 + $0x558] sm:$0xff]
    %v253 = vld [vmem:[#allocation5 + $0x560] sm:$0xff]
    %v254 = vld [vmem:[#allocation5 + $0x568] sm:$0xff]
    %v255 = vld [vmem:[#allocation5 + $0x570] sm:$0xff]
    %v256 = vld [vmem:[#allocation5 + $0x578] sm:$0xff]
    %v257 = vld [vmem:[#allocation5 + $0x580] sm:$0xff]
    %v258 = vld [vmem:[#allocation5 + $0x588] sm:$0xff]
    %v259 = vld [vmem:[#allocation5 + $0x590] sm:$0xff]
    %v260 = vld [vmem:[#allocation5 + $0x598] sm:$0xff]
    %v261 = vld [vmem:[#allocation5 + $0x5a0] sm:$0xff]
    %v262 = vld [vmem:[#allocation5 + $0x5a8] sm:$0xff]
    %v263 = vld [vmem:[#allocation5 + $0x5b0] sm:$0xff]
    %v264 = vld [vmem:[#allocation5 + $0x5b8] sm:$0xff]
    %v265 = vld [vmem:[#allocation5 + $0x5c0] sm:$0xff]
    %v266 = vld [vmem:[#allocation5 + $0x5c8] sm:$0xff]
    %v267 = vld [vmem:[#allocation5 + $0x5d0] sm:$0xff]
    %v268 = vld [vmem:[#allocation5 + $0x5d8] sm:$0xff]
    %v269 = vld [vmem:[#allocation5 + $0x5e0] sm:$0xff]
    %v270 = vld [vmem:[#allocation5 + $0x5e8] sm:$0xff]
    %v271 = vld [vmem:[#allocation5 + $0x5f0] sm:$0xff]
    %v272 = vld [vmem:[#allocation5 + $0x5f8] sm:$0xff]
    %v273 = vld [vmem:[#allocation7] sm:$0xf]
    %v275 = vlaneseq
    %v276 = vshrl.u32 %v275, 7
    %v277 = vsub.s32 0, %v276
    %v278 = vrot.slane %v273, %v277
    %v279 = vlaneseq
    %v280 = vshrl.u32 %v279, 7
    %v281 = vsub.s32 1, %v280
    %v282 = vrot.slane %v273, %v281
    %v283 = vlaneseq
    %v284 = vshrl.u32 %v283, 7
    %v285 = vsub.s32 2, %v284
    %v286 = vrot.slane %v273, %v285
    %v287 = vlaneseq
    %v288 = vshrl.u32 %v287, 7
    %v289 = vsub.s32 3, %v288
    %v290 = vrot.slane %v273, %v289
    %v301 = vunpack.c.l.b16 %v75
    %v302 = vunpack.c.h.b16 %v75
    %v303 = vunpack.c.l.b16 %v76
    %v304 = vunpack.c.h.b16 %v76
    %v305 = vunpack.c.l.b16 %v77
    %v306 = vunpack.c.h.b16 %v77
    %v307 = vunpack.c.l.b16 %v78
    %v308 = vunpack.c.h.b16 %v78
    %v309 = vunpack.c.l.b16 %v79
    %v310 = vunpack.c.h.b16 %v79
    %v311 = vunpack.c.l.b16 %v80
    %v312 = vunpack.c.h.b16 %v80
    %v313 = vpack.c.b16 %v307, %v301
    %v314 = vpack.c.b16 %v308, %v302
    %v315 = vpack.c.b16 %v309, %v303
    %v316 = vpack.c.b16 %v310, %v304
    %v317 = vpack.c.b16 %v311, %v305
    %v318 = vpack.c.b16 %v312, %v306
    %v517 = vunpack.c.l.b16 %v81
    %v518 = vunpack.c.h.b16 %v81
    %v519 = vunpack.c.l.b16 %v82
    %v520 = vunpack.c.h.b16 %v82
    %v521 = vunpack.c.l.b16 %v83
    %v522 = vunpack.c.h.b16 %v83
    %v523 = vunpack.c.l.b16 %v84
    %v524 = vunpack.c.h.b16 %v84
    %v525 = vunpack.c.l.b16 %v85
    %v526 = vunpack.c.h.b16 %v85
    %v527 = vunpack.c.l.b16 %v86
    %v528 = vunpack.c.h.b16 %v86
    %v529 = vunpack.c.l.b16 %v87
    %v530 = vunpack.c.h.b16 %v87
    %v531 = vunpack.c.l.b16 %v88
    %v532 = vunpack.c.h.b16 %v88
    %v533 = vunpack.c.l.b16 %v89
    %v534 = vunpack.c.h.b16 %v89
    %v535 = vunpack.c.l.b16 %v90
    %v536 = vunpack.c.h.b16 %v90
    %v537 = vunpack.c.l.b16 %v91
    %v538 = vunpack.c.h.b16 %v91
    %v539 = vunpack.c.l.b16 %v92
    %v540 = vunpack.c.h.b16 %v92
    %v541 = vunpack.c.l.b16 %v93
    %v542 = vunpack.c.h.b16 %v93
    %v543 = vunpack.c.l.b16 %v94
    %v544 = vunpack.c.h.b16 %v94
    %v545 = vunpack.c.l.b16 %v95
    %v546 = vunpack.c.h.b16 %v95
    %v547 = vunpack.c.l.b16 %v96
    %v548 = vunpack.c.h.b16 %v96
    %v549 = vunpack.c.l.b16 %v97
    %v550 = vunpack.c.h.b16 %v97
    %v551 = vunpack.c.l.b16 %v98
    %v552 = vunpack.c.h.b16 %v98
    %v553 = vunpack.c.l.b16 %v99
    %v554 = vunpack.c.h.b16 %v99
    %v555 = vunpack.c.l.b16 %v100
    %v556 = vunpack.c.h.b16 %v100
    %v557 = vunpack.c.l.b16 %v101
    %v558 = vunpack.c.h.b16 %v101
    %v559 = vunpack.c.l.b16 %v102
    %v560 = vunpack.c.h.b16 %v102
    %v561 = vunpack.c.l.b16 %v103
    %v562 = vunpack.c.h.b16 %v103
    %v563 = vunpack.c.l.b16 %v104
    %v564 = vunpack.c.h.b16 %v104
    %v565 = vunpack.c.l.b16 %v105
    %v566 = vunpack.c.h.b16 %v105
    %v567 = vunpack.c.l.b16 %v106
    %v568 = vunpack.c.h.b16 %v106
    %v569 = vunpack.c.l.b16 %v107
    %v570 = vunpack.c.h.b16 %v107
    %v571 = vunpack.c.l.b16 %v108
    %v572 = vunpack.c.h.b16 %v108
    %v573 = vunpack.c.l.b16 %v109
    %v574 = vunpack.c.h.b16 %v109
    %v575 = vunpack.c.l.b16 %v110
    %v576 = vunpack.c.h.b16 %v110
    %v577 = vunpack.c.l.b16 %v111
    %v578 = vunpack.c.h.b16 %v111
    %v579 = vunpack.c.l.b16 %v112
    %v580 = vunpack.c.h.b16 %v112
    %v581 = vunpack.c.l.b16 %v113
    %v582 = vunpack.c.h.b16 %v113
    %v583 = vunpack.c.l.b16 %v114
    %v584 = vunpack.c.h.b16 %v114
    %v585 = vunpack.c.l.b16 %v115
    %v586 = vunpack.c.h.b16 %v115
    %v587 = vunpack.c.l.b16 %v116
    %v588 = vunpack.c.h.b16 %v116
    %v589 = vunpack.c.l.b16 %v117
    %v590 = vunpack.c.h.b16 %v117
    %v591 = vunpack.c.l.b16 %v118
    %v592 = vunpack.c.h.b16 %v118
    %v593 = vunpack.c.l.b16 %v119
    %v594 = vunpack.c.h.b16 %v119
    %v595 = vunpack.c.l.b16 %v120
    %v596 = vunpack.c.h.b16 %v120
    %v597 = vunpack.c.l.b16 %v121
    %v598 = vunpack.c.h.b16 %v121
    %v599 = vunpack.c.l.b16 %v122
    %v600 = vunpack.c.h.b16 %v122
    %v601 = vunpack.c.l.b16 %v123
    %v602 = vunpack.c.h.b16 %v123
    %v603 = vunpack.c.l.b16 %v124
    %v604 = vunpack.c.h.b16 %v124
    %v605 = vunpack.c.l.b16 %v125
    %v606 = vunpack.c.h.b16 %v125
    %v607 = vunpack.c.l.b16 %v126
    %v608 = vunpack.c.h.b16 %v126
    %v609 = vunpack.c.l.b16 %v127
    %v610 = vunpack.c.h.b16 %v127
    %v611 = vunpack.c.l.b16 %v128
    %v612 = vunpack.c.h.b16 %v128
    %v613 = vunpack.c.l.b16 %v129
    %v614 = vunpack.c.h.b16 %v129
    %v615 = vunpack.c.l.b16 %v130
    %v616 = vunpack.c.h.b16 %v130
    %v617 = vunpack.c.l.b16 %v131
    %v618 = vunpack.c.h.b16 %v131
    %v619 = vunpack.c.l.b16 %v132
    %v620 = vunpack.c.h.b16 %v132
    %v621 = vunpack.c.l.b16 %v133
    %v622 = vunpack.c.h.b16 %v133
    %v623 = vunpack.c.l.b16 %v134
    %v624 = vunpack.c.h.b16 %v134
    %v625 = vunpack.c.l.b16 %v135
    %v626 = vunpack.c.h.b16 %v135
    %v627 = vunpack.c.l.b16 %v136
    %v628 = vunpack.c.h.b16 %v136
    %v629 = vunpack.c.l.b16 %v137
    %v630 = vunpack.c.h.b16 %v137
    %v631 = vunpack.c.l.b16 %v138
    %v632 = vunpack.c.h.b16 %v138
    %v633 = vunpack.c.l.b16 %v139
    %v634 = vunpack.c.h.b16 %v139
    %v635 = vunpack.c.l.b16 %v140
    %v636 = vunpack.c.h.b16 %v140
    %v637 = vunpack.c.l.b16 %v141
    %v638 = vunpack.c.h.b16 %v141
    %v639 = vunpack.c.l.b16 %v142
    %v640 = vunpack.c.h.b16 %v142
    %v641 = vunpack.c.l.b16 %v143
    %v642 = vunpack.c.h.b16 %v143
    %v643 = vunpack.c.l.b16 %v144
    %v644 = vunpack.c.h.b16 %v144
    %v645 = vunpack.c.l.b16 %v145
    %v646 = vunpack.c.h.b16 %v145
    %v647 = vunpack.c.l.b16 %v146
    %v648 = vunpack.c.h.b16 %v146
    %v649 = vunpack.c.l.b16 %v147
    %v650 = vunpack.c.h.b16 %v147
    %v651 = vunpack.c.l.b16 %v148
    %v652 = vunpack.c.h.b16 %v148
    %v653 = vunpack.c.l.b16 %v149
    %v654 = vunpack.c.h.b16 %v149
    %v655 = vunpack.c.l.b16 %v150
    %v656 = vunpack.c.h.b16 %v150
    %v657 = vunpack.c.l.b16 %v151
    %v658 = vunpack.c.h.b16 %v151
    %v659 = vunpack.c.l.b16 %v152
    %v660 = vunpack.c.h.b16 %v152
    %v661 = vunpack.c.l.b16 %v153
    %v662 = vunpack.c.h.b16 %v153
    %v663 = vunpack.c.l.b16 %v154
    %v664 = vunpack.c.h.b16 %v154
    %v665 = vunpack.c.l.b16 %v155
    %v666 = vunpack.c.h.b16 %v155
    %v667 = vunpack.c.l.b16 %v156
    %v668 = vunpack.c.h.b16 %v156
    %v669 = vunpack.c.l.b16 %v157
    %v670 = vunpack.c.h.b16 %v157
    %v671 = vunpack.c.l.b16 %v158
    %v672 = vunpack.c.h.b16 %v158
    %v673 = vunpack.c.l.b16 %v159
    %v674 = vunpack.c.h.b16 %v159
    %v675 = vunpack.c.l.b16 %v160
    %v676 = vunpack.c.h.b16 %v160
    %v677 = vunpack.c.l.b16 %v161
    %v678 = vunpack.c.h.b16 %v161
    %v679 = vunpack.c.l.b16 %v162
    %v680 = vunpack.c.h.b16 %v162
    %v681 = vunpack.c.l.b16 %v163
    %v682 = vunpack.c.h.b16 %v163
    %v683 = vunpack.c.l.b16 %v164
    %v684 = vunpack.c.h.b16 %v164
    %v685 = vunpack.c.l.b16 %v165
    %v686 = vunpack.c.h.b16 %v165
    %v687 = vunpack.c.l.b16 %v166
    %v688 = vunpack.c.h.b16 %v166
    %v689 = vunpack.c.l.b16 %v167
    %v690 = vunpack.c.h.b16 %v167
    %v691 = vunpack.c.l.b16 %v168
    %v692 = vunpack.c.h.b16 %v168
    %v693 = vunpack.c.l.b16 %v169
    %v694 = vunpack.c.h.b16 %v169
    %v695 = vunpack.c.l.b16 %v170
    %v696 = vunpack.c.h.b16 %v170
    %v697 = vunpack.c.l.b16 %v171
    %v698 = vunpack.c.h.b16 %v171
    %v699 = vunpack.c.l.b16 %v172
    %v700 = vunpack.c.h.b16 %v172
    %v701 = vunpack.c.l.b16 %v173
    %v702 = vunpack.c.h.b16 %v173
    %v703 = vunpack.c.l.b16 %v174
    %v704 = vunpack.c.h.b16 %v174
    %v705 = vunpack.c.l.b16 %v175
    %v706 = vunpack.c.h.b16 %v175
    %v707 = vunpack.c.l.b16 %v176
    %v708 = vunpack.c.h.b16 %v176
    %v709 = vunpack.c.l.b16 %v177
    %v710 = vunpack.c.h.b16 %v177
    %v711 = vunpack.c.l.b16 %v178
    %v712 = vunpack.c.h.b16 %v178
    %v713 = vunpack.c.l.b16 %v179
    %v714 = vunpack.c.h.b16 %v179
    %v715 = vunpack.c.l.b16 %v180
    %v716 = vunpack.c.h.b16 %v180
    %v717 = vunpack.c.l.b16 %v181
    %v718 = vunpack.c.h.b16 %v181
    %v719 = vunpack.c.l.b16 %v182
    %v720 = vunpack.c.h.b16 %v182
    %v721 = vunpack.c.l.b16 %v183
    %v722 = vunpack.c.h.b16 %v183
    %v723 = vunpack.c.l.b16 %v184
    %v724 = vunpack.c.h.b16 %v184
    %v725 = vunpack.c.l.b16 %v185
    %v726 = vunpack.c.h.b16 %v185
    %v727 = vunpack.c.l.b16 %v186
    %v728 = vunpack.c.h.b16 %v186
    %v729 = vunpack.c.l.b16 %v187
    %v730 = vunpack.c.h.b16 %v187
    %v731 = vunpack.c.l.b16 %v188
    %v732 = vunpack.c.h.b16 %v188
    %v733 = vunpack.c.l.b16 %v189
    %v734 = vunpack.c.h.b16 %v189
    %v735 = vunpack.c.l.b16 %v190
    %v736 = vunpack.c.h.b16 %v190
    %v737 = vunpack.c.l.b16 %v191
    %v738 = vunpack.c.h.b16 %v191
    %v739 = vunpack.c.l.b16 %v192
    %v740 = vunpack.c.h.b16 %v192
    %v741 = vunpack.c.l.b16 %v193
    %v742 = vunpack.c.h.b16 %v193
    %v743 = vunpack.c.l.b16 %v194
    %v744 = vunpack.c.h.b16 %v194
    %v745 = vunpack.c.l.b16 %v195
    %v746 = vunpack.c.h.b16 %v195
    %v747 = vunpack.c.l.b16 %v196
    %v748 = vunpack.c.h.b16 %v196
    %v749 = vunpack.c.l.b16 %v197
    %v750 = vunpack.c.h.b16 %v197
    %v751 = vunpack.c.l.b16 %v198
    %v752 = vunpack.c.h.b16 %v198
    %v753 = vunpack.c.l.b16 %v199
    %v754 = vunpack.c.h.b16 %v199
    %v755 = vunpack.c.l.b16 %v200
    %v756 = vunpack.c.h.b16 %v200
    %v757 = vunpack.c.l.b16 %v201
    %v758 = vunpack.c.h.b16 %v201
    %v759 = vunpack.c.l.b16 %v202
    %v760 = vunpack.c.h.b16 %v202
    %v761 = vunpack.c.l.b16 %v203
    %v762 = vunpack.c.h.b16 %v203
    %v763 = vunpack.c.l.b16 %v204
    %v764 = vunpack.c.h.b16 %v204
    %v765 = vunpack.c.l.b16 %v205
    %v766 = vunpack.c.h.b16 %v205
    %v767 = vunpack.c.l.b16 %v206
    %v768 = vunpack.c.h.b16 %v206
    %v769 = vunpack.c.l.b16 %v207
    %v770 = vunpack.c.h.b16 %v207
    %v771 = vunpack.c.l.b16 %v208
    %v772 = vunpack.c.h.b16 %v208
    %v773 = vunpack.c.l.b16 %v209
    %v774 = vunpack.c.h.b16 %v209
    %v775 = vunpack.c.l.b16 %v210
    %v776 = vunpack.c.h.b16 %v210
    %v777 = vunpack.c.l.b16 %v211
    %v778 = vunpack.c.h.b16 %v211
    %v779 = vunpack.c.l.b16 %v212
    %v780 = vunpack.c.h.b16 %v212
    %v781 = vunpack.c.l.b16 %v213
    %v782 = vunpack.c.h.b16 %v213
    %v783 = vunpack.c.l.b16 %v214
    %v784 = vunpack.c.h.b16 %v214
    %v785 = vunpack.c.l.b16 %v215
    %v786 = vunpack.c.h.b16 %v215
    %v787 = vunpack.c.l.b16 %v216
    %v788 = vunpack.c.h.b16 %v216
    %v789 = vunpack.c.l.b16 %v217
    %v790 = vunpack.c.h.b16 %v217
    %v791 = vunpack.c.l.b16 %v218
    %v792 = vunpack.c.h.b16 %v218
    %v793 = vunpack.c.l.b16 %v219
    %v794 = vunpack.c.h.b16 %v219
    %v795 = vunpack.c.l.b16 %v220
    %v796 = vunpack.c.h.b16 %v220
    %v797 = vunpack.c.l.b16 %v221
    %v798 = vunpack.c.h.b16 %v221
    %v799 = vunpack.c.l.b16 %v222
    %v800 = vunpack.c.h.b16 %v222
    %v801 = vunpack.c.l.b16 %v223
    %v802 = vunpack.c.h.b16 %v223
    %v803 = vunpack.c.l.b16 %v224
    %v804 = vunpack.c.h.b16 %v224
    %v805 = vunpack.c.l.b16 %v225
    %v806 = vunpack.c.h.b16 %v225
    %v807 = vunpack.c.l.b16 %v226
    %v808 = vunpack.c.h.b16 %v226
    %v809 = vunpack.c.l.b16 %v227
    %v810 = vunpack.c.h.b16 %v227
    %v811 = vunpack.c.l.b16 %v228
    %v812 = vunpack.c.h.b16 %v228
    %v813 = vunpack.c.l.b16 %v229
    %v814 = vunpack.c.h.b16 %v229
    %v815 = vunpack.c.l.b16 %v230
    %v816 = vunpack.c.h.b16 %v230
    %v817 = vunpack.c.l.b16 %v231
    %v818 = vunpack.c.h.b16 %v231
    %v819 = vunpack.c.l.b16 %v232
    %v820 = vunpack.c.h.b16 %v232
    %v821 = vunpack.c.l.b16 %v233
    %v822 = vunpack.c.h.b16 %v233
    %v823 = vunpack.c.l.b16 %v234
    %v824 = vunpack.c.h.b16 %v234
    %v825 = vunpack.c.l.b16 %v235
    %v826 = vunpack.c.h.b16 %v235
    %v827 = vunpack.c.l.b16 %v236
    %v828 = vunpack.c.h.b16 %v236
    %v829 = vunpack.c.l.b16 %v237
    %v830 = vunpack.c.h.b16 %v237
    %v831 = vunpack.c.l.b16 %v238
    %v832 = vunpack.c.h.b16 %v238
    %v833 = vunpack.c.l.b16 %v239
    %v834 = vunpack.c.h.b16 %v239
    %v835 = vunpack.c.l.b16 %v240
    %v836 = vunpack.c.h.b16 %v240
    %v837 = vunpack.c.l.b16 %v241
    %v838 = vunpack.c.h.b16 %v241
    %v839 = vunpack.c.l.b16 %v242
    %v840 = vunpack.c.h.b16 %v242
    %v841 = vunpack.c.l.b16 %v243
    %v842 = vunpack.c.h.b16 %v243
    %v843 = vunpack.c.l.b16 %v244
    %v844 = vunpack.c.h.b16 %v244
    %v845 = vunpack.c.l.b16 %v245
    %v846 = vunpack.c.h.b16 %v245
    %v847 = vunpack.c.l.b16 %v246
    %v848 = vunpack.c.h.b16 %v246
    %v849 = vunpack.c.l.b16 %v247
    %v850 = vunpack.c.h.b16 %v247
    %v851 = vunpack.c.l.b16 %v248
    %v852 = vunpack.c.h.b16 %v248
    %v853 = vunpack.c.l.b16 %v249
    %v854 = vunpack.c.h.b16 %v249
    %v855 = vunpack.c.l.b16 %v250
    %v856 = vunpack.c.h.b16 %v250
    %v857 = vunpack.c.l.b16 %v251
    %v858 = vunpack.c.h.b16 %v251
    %v859 = vunpack.c.l.b16 %v252
    %v860 = vunpack.c.h.b16 %v252
    %v861 = vunpack.c.l.b16 %v253
    %v862 = vunpack.c.h.b16 %v253
    %v863 = vunpack.c.l.b16 %v254
    %v864 = vunpack.c.h.b16 %v254
    %v865 = vunpack.c.l.b16 %v255
    %v866 = vunpack.c.h.b16 %v255
    %v867 = vunpack.c.l.b16 %v256
    %v868 = vunpack.c.h.b16 %v256
    %v869 = vunpack.c.l.b16 %v257
    %v870 = vunpack.c.h.b16 %v257
    %v871 = vunpack.c.l.b16 %v258
    %v872 = vunpack.c.h.b16 %v258
    %v873 = vunpack.c.l.b16 %v259
    %v874 = vunpack.c.h.b16 %v259
    %v875 = vunpack.c.l.b16 %v260
    %v876 = vunpack.c.h.b16 %v260
    %v877 = vunpack.c.l.b16 %v261
    %v878 = vunpack.c.h.b16 %v261
    %v879 = vunpack.c.l.b16 %v262
    %v880 = vunpack.c.h.b16 %v262
    %v881 = vunpack.c.l.b16 %v263
    %v882 = vunpack.c.h.b16 %v263
    %v883 = vunpack.c.l.b16 %v264
    %v884 = vunpack.c.h.b16 %v264
    %v885 = vunpack.c.l.b16 %v265
    %v886 = vunpack.c.h.b16 %v265
    %v887 = vunpack.c.l.b16 %v266
    %v888 = vunpack.c.h.b16 %v266
    %v889 = vunpack.c.l.b16 %v267
    %v890 = vunpack.c.h.b16 %v267
    %v891 = vunpack.c.l.b16 %v268
    %v892 = vunpack.c.h.b16 %v268
    %v893 = vunpack.c.l.b16 %v269
    %v894 = vunpack.c.h.b16 %v269
    %v895 = vunpack.c.l.b16 %v270
    %v896 = vunpack.c.h.b16 %v270
    %v897 = vunpack.c.l.b16 %v271
    %v898 = vunpack.c.h.b16 %v271
    %v899 = vunpack.c.l.b16 %v272
    %v900 = vunpack.c.h.b16 %v272
    %v901 = vpack.c.b16 %v521, %v517
    %v902 = vpack.c.b16 %v522, %v518
    %v903 = vpack.c.b16 %v523, %v519
    %v904 = vpack.c.b16 %v524, %v520
    %v905 = vpack.c.b16 %v529, %v525
    %v906 = vpack.c.b16 %v530, %v526
    %v907 = vpack.c.b16 %v531, %v527
    %v908 = vpack.c.b16 %v532, %v528
    %v909 = vpack.c.b16 %v537, %v533
    %v910 = vpack.c.b16 %v538, %v534
    %v911 = vpack.c.b16 %v539, %v535
    %v912 = vpack.c.b16 %v540, %v536
    %v913 = vpack.c.b16 %v545, %v541
    %v914 = vpack.c.b16 %v546, %v542
    %v915 = vpack.c.b16 %v547, %v543
    %v916 = vpack.c.b16 %v548, %v544
    %v917 = vpack.c.b16 %v553, %v549
    %v918 = vpack.c.b16 %v554, %v550
    %v919 = vpack.c.b16 %v555, %v551
    %v920 = vpack.c.b16 %v556, %v552
    %v921 = vpack.c.b16 %v561, %v557
    %v922 = vpack.c.b16 %v562, %v558
    %v923 = vpack.c.b16 %v563, %v559
    %v924 = vpack.c.b16 %v564, %v560
    %v925 = vpack.c.b16 %v569, %v565
    %v926 = vpack.c.b16 %v570, %v566
    %v927 = vpack.c.b16 %v571, %v567
    %v928 = vpack.c.b16 %v572, %v568
    %v929 = vpack.c.b16 %v577, %v573
    %v930 = vpack.c.b16 %v578, %v574
    %v931 = vpack.c.b16 %v579, %v575
    %v932 = vpack.c.b16 %v580, %v576
    %v933 = vpack.c.b16 %v585, %v581
    %v934 = vpack.c.b16 %v586, %v582
    %v935 = vpack.c.b16 %v587, %v583
    %v936 = vpack.c.b16 %v588, %v584
    %v937 = vpack.c.b16 %v593, %v589
    %v938 = vpack.c.b16 %v594, %v590
    %v939 = vpack.c.b16 %v595, %v591
    %v940 = vpack.c.b16 %v596, %v592
    %v941 = vpack.c.b16 %v601, %v597
    %v942 = vpack.c.b16 %v602, %v598
    %v943 = vpack.c.b16 %v603, %v599
    %v944 = vpack.c.b16 %v604, %v600
    %v945 = vpack.c.b16 %v609, %v605
    %v946 = vpack.c.b16 %v610, %v606
    %v947 = vpack.c.b16 %v611, %v607
    %v948 = vpack.c.b16 %v612, %v608
    %v949 = vpack.c.b16 %v617, %v613
    %v950 = vpack.c.b16 %v618, %v614
    %v951 = vpack.c.b16 %v619, %v615
    %v952 = vpack.c.b16 %v620, %v616
    %v953 = vpack.c.b16 %v625, %v621
    %v954 = vpack.c.b16 %v626, %v622
    %v955 = vpack.c.b16 %v627, %v623
    %v956 = vpack.c.b16 %v628, %v624
    %v957 = vpack.c.b16 %v633, %v629
    %v958 = vpack.c.b16 %v634, %v630
    %v959 = vpack.c.b16 %v635, %v631
    %v960 = vpack.c.b16 %v636, %v632
    %v961 = vpack.c.b16 %v641, %v637
    %v962 = vpack.c.b16 %v642, %v638
    %v963 = vpack.c.b16 %v643, %v639
    %v964 = vpack.c.b16 %v644, %v640
    %v965 = vpack.c.b16 %v649, %v645
    %v966 = vpack.c.b16 %v650, %v646
    %v967 = vpack.c.b16 %v651, %v647
    %v968 = vpack.c.b16 %v652, %v648
    %v969 = vpack.c.b16 %v657, %v653
    %v970 = vpack.c.b16 %v658, %v654
    %v971 = vpack.c.b16 %v659, %v655
    %v972 = vpack.c.b16 %v660, %v656
    %v973 = vpack.c.b16 %v665, %v661
    %v974 = vpack.c.b16 %v666, %v662
    %v975 = vpack.c.b16 %v667, %v663
    %v976 = vpack.c.b16 %v668, %v664
    %v977 = vpack.c.b16 %v673, %v669
    %v978 = vpack.c.b16 %v674, %v670
    %v979 = vpack.c.b16 %v675, %v671
    %v980 = vpack.c.b16 %v676, %v672
    %v981 = vpack.c.b16 %v681, %v677
    %v982 = vpack.c.b16 %v682, %v678
    %v983 = vpack.c.b16 %v683, %v679
    %v984 = vpack.c.b16 %v684, %v680
    %v985 = vpack.c.b16 %v689, %v685
    %v986 = vpack.c.b16 %v690, %v686
    %v987 = vpack.c.b16 %v691, %v687
    %v988 = vpack.c.b16 %v692, %v688
    %v989 = vpack.c.b16 %v697, %v693
    %v990 = vpack.c.b16 %v698, %v694
    %v991 = vpack.c.b16 %v699, %v695
    %v992 = vpack.c.b16 %v700, %v696
    %v993 = vpack.c.b16 %v705, %v701
    %v994 = vpack.c.b16 %v706, %v702
    %v995 = vpack.c.b16 %v707, %v703
    %v996 = vpack.c.b16 %v708, %v704
    %v997 = vpack.c.b16 %v713, %v709
    %v998 = vpack.c.b16 %v714, %v710
    %v999 = vpack.c.b16 %v715, %v711
    %v1000 = vpack.c.b16 %v716, %v712
    %v1001 = vpack.c.b16 %v721, %v717
    %v1002 = vpack.c.b16 %v722, %v718
    %v1003 = vpack.c.b16 %v723, %v719
    %v1004 = vpack.c.b16 %v724, %v720
    %v1005 = vpack.c.b16 %v729, %v725
    %v1006 = vpack.c.b16 %v730, %v726
    %v1007 = vpack.c.b16 %v731, %v727
    %v1008 = vpack.c.b16 %v732, %v728
    %v1009 = vpack.c.b16 %v737, %v733
    %v1010 = vpack.c.b16 %v738, %v734
    %v1011 = vpack.c.b16 %v739, %v735
    %v1012 = vpack.c.b16 %v740, %v736
    %v1013 = vpack.c.b16 %v745, %v741
    %v1014 = vpack.c.b16 %v746, %v742
    %v1015 = vpack.c.b16 %v747, %v743
    %v1016 = vpack.c.b16 %v748, %v744
    %v1017 = vpack.c.b16 %v753, %v749
    %v1018 = vpack.c.b16 %v754, %v750
    %v1019 = vpack.c.b16 %v755, %v751
    %v1020 = vpack.c.b16 %v756, %v752
    %v1021 = vpack.c.b16 %v761, %v757
    %v1022 = vpack.c.b16 %v762, %v758
    %v1023 = vpack.c.b16 %v763, %v759
    %v1024 = vpack.c.b16 %v764, %v760
    %v1025 = vpack.c.b16 %v769, %v765
    %v1026 = vpack.c.b16 %v770, %v766
    %v1027 = vpack.c.b16 %v771, %v767
    %v1028 = vpack.c.b16 %v772, %v768
    %v1029 = vpack.c.b16 %v777, %v773
    %v1030 = vpack.c.b16 %v778, %v774
    %v1031 = vpack.c.b16 %v779, %v775
    %v1032 = vpack.c.b16 %v780, %v776
    %v1033 = vpack.c.b16 %v785, %v781
    %v1034 = vpack.c.b16 %v786, %v782
    %v1035 = vpack.c.b16 %v787, %v783
    %v1036 = vpack.c.b16 %v788, %v784
    %v1037 = vpack.c.b16 %v793, %v789
    %v1038 = vpack.c.b16 %v794, %v790
    %v1039 = vpack.c.b16 %v795, %v791
    %v1040 = vpack.c.b16 %v796, %v792
    %v1041 = vpack.c.b16 %v801, %v797
    %v1042 = vpack.c.b16 %v802, %v798
    %v1043 = vpack.c.b16 %v803, %v799
    %v1044 = vpack.c.b16 %v804, %v800
    %v1045 = vpack.c.b16 %v809, %v805
    %v1046 = vpack.c.b16 %v810, %v806
    %v1047 = vpack.c.b16 %v811, %v807
    %v1048 = vpack.c.b16 %v812, %v808
    %v1049 = vpack.c.b16 %v817, %v813
    %v1050 = vpack.c.b16 %v818, %v814
    %v1051 = vpack.c.b16 %v819, %v815
    %v1052 = vpack.c.b16 %v820, %v816
    %v1053 = vpack.c.b16 %v825, %v821
    %v1054 = vpack.c.b16 %v826, %v822
    %v1055 = vpack.c.b16 %v827, %v823
    %v1056 = vpack.c.b16 %v828, %v824
    %v1057 = vpack.c.b16 %v833, %v829
    %v1058 = vpack.c.b16 %v834, %v830
    %v1059 = vpack.c.b16 %v835, %v831
    %v1060 = vpack.c.b16 %v836, %v832
    %v1061 = vpack.c.b16 %v841, %v837
    %v1062 = vpack.c.b16 %v842, %v838
    %v1063 = vpack.c.b16 %v843, %v839
    %v1064 = vpack.c.b16 %v844, %v840
    %v1065 = vpack.c.b16 %v849, %v845
    %v1066 = vpack.c.b16 %v850, %v846
    %v1067 = vpack.c.b16 %v851, %v847
    %v1068 = vpack.c.b16 %v852, %v848
    %v1069 = vpack.c.b16 %v857, %v853
    %v1070 = vpack.c.b16 %v858, %v854
    %v1071 = vpack.c.b16 %v859, %v855
    %v1072 = vpack.c.b16 %v860, %v856
    %v1073 = vpack.c.b16 %v865, %v861
    %v1074 = vpack.c.b16 %v866, %v862
    %v1075 = vpack.c.b16 %v867, %v863
    %v1076 = vpack.c.b16 %v868, %v864
    %v1077 = vpack.c.b16 %v873, %v869
    %v1078 = vpack.c.b16 %v874, %v870
    %v1079 = vpack.c.b16 %v875, %v871
    %v1080 = vpack.c.b16 %v876, %v872
    %v1081 = vpack.c.b16 %v881, %v877
    %v1082 = vpack.c.b16 %v882, %v878
    %v1083 = vpack.c.b16 %v883, %v879
    %v1084 = vpack.c.b16 %v884, %v880
    %v1085 = vpack.c.b16 %v889, %v885
    %v1086 = vpack.c.b16 %v890, %v886
    %v1087 = vpack.c.b16 %v891, %v887
    %v1088 = vpack.c.b16 %v892, %v888
    %v1089 = vpack.c.b16 %v897, %v893
    %v1090 = vpack.c.b16 %v898, %v894
    %v1091 = vpack.c.b16 %v899, %v895
    %v1092 = vpack.c.b16 %v900, %v896
    %1285 = vmatprep.subr.bf16.mxu0 %v930
    %1286 = vmatpush1.bf16.msra.mxu0 %v929
    %1287 = vmatprep.subr.bf16.mxu0 %v926
    %1288 = vmatpush1.bf16.msra.mxu0 %v925
    %1289 = vmatprep.subr.bf16.mxu0 %v922
    %1290 = vmatpush1.bf16.msra.mxu0 %v921
    %1291 = vmatprep.subr.bf16.mxu0 %v918
    %1292 = vmatpush1.bf16.msra.mxu0 %v917
    %1293 = vmatprep.subr.bf16.mxu0 %v914
    %1294 = vmatpush1.bf16.msra.mxu0 %v913
    %1295 = vmatprep.subr.bf16.mxu0 %v910
    %1296 = vmatpush1.bf16.msra.mxu0 %v909
    %1297 = vmatprep.subr.bf16.mxu0 %v906
    %1298 = vmatpush1.bf16.msra.mxu0 %v905
    %1299 = vmatprep.subr.bf16.mxu0 %v902
    %1300 = vmatpush1.bf16.msra.mxu0 %v901
    %1301 = vmatprep.subr.bf16.mxu0 %v962
    %1302 = vmatpush2.bf16.msra.mxu0 %v961
    %1303 = vmatprep.subr.bf16.mxu0 %v958
    %1304 = vmatpush2.bf16.msra.mxu0 %v957
    %1305 = vmatprep.subr.bf16.mxu0 %v954
    %1306 = vmatpush2.bf16.msra.mxu0 %v953
    %1307 = vmatprep.subr.bf16.mxu0 %v950
    %1308 = vmatpush2.bf16.msra.mxu0 %v949
    %1309 = vmatprep.subr.bf16.mxu0 %v946
    %1310 = vmatpush2.bf16.msra.mxu0 %v945
    %1311 = vmatprep.subr.bf16.mxu0 %v942
    %1312 = vmatpush2.bf16.msra.mxu0 %v941
    %1313 = vmatprep.subr.bf16.mxu0 %v938
    %1314 = vmatpush2.bf16.msra.mxu0 %v937
    %1315 = vmatprep.subr.bf16.mxu0 %v934
    %1316 = vmatpush2.bf16.msra.mxu0 %v933
    %1317 = vmatprep.mubr.bf16.mxu0 %v314
    %1318 = vmatmul.mubr.bf16.gmra.mxu0 %v313
    %v1319 = vpop.f32.mrf.mxu0
    %v1320 = vadd.f32 %v278, %v1319
    %v1321 = vpop.f32.mrf.mxu0
    %v1322 = vadd.f32 %v282, %v1321
    %v1323 = vpop.f32.mrf.mxu0
    %v1324 = vadd.f32 %v278, %v1323
    %v1325 = vpop.f32.mrf.mxu0
    %v1326 = vadd.f32 %v282, %v1325
    %1327 = vdwg.mxu0
    %1328 = vmatprep.subr.bf16.mxu0 %v994
    %1329 = vmatpush1.bf16.msra.mxu0 %v993
    %1330 = vmatprep.subr.bf16.mxu0 %v990
    %1331 = vmatpush1.bf16.msra.mxu0 %v989
    %1332 = vmatprep.subr.bf16.mxu0 %v986
    %1333 = vmatpush1.bf16.msra.mxu0 %v985
    %1334 = vmatprep.subr.bf16.mxu0 %v982
    %1335 = vmatpush1.bf16.msra.mxu0 %v981
    %1336 = vmatprep.subr.bf16.mxu0 %v978
    %1337 = vmatpush1.bf16.msra.mxu0 %v977
    %1338 = vmatprep.subr.bf16.mxu0 %v974
    %1339 = vmatpush1.bf16.msra.mxu0 %v973
    %1340 = vmatprep.subr.bf16.mxu0 %v970
    %1341 = vmatpush1.bf16.msra.mxu0 %v969
    %1342 = vmatprep.subr.bf16.mxu0 %v966
    %1343 = vmatpush1.bf16.msra.mxu0 %v965
    %1344 = vmatprep.subr.bf16.mxu0 %v1026
    %1345 = vmatpush2.bf16.msra.mxu0 %v1025
    %1346 = vmatprep.subr.bf16.mxu0 %v1022
    %1347 = vmatpush2.bf16.msra.mxu0 %v1021
    %1348 = vmatprep.subr.bf16.mxu0 %v1018
    %1349 = vmatpush2.bf16.msra.mxu0 %v1017
    %1350 = vmatprep.subr.bf16.mxu0 %v1014
    %1351 = vmatpush2.bf16.msra.mxu0 %v1013
    %1352 = vmatprep.subr.bf16.mxu0 %v1010
    %1353 = vmatpush2.bf16.msra.mxu0 %v1009
    %1354 = vmatprep.subr.bf16.mxu0 %v1006
    %1355 = vmatpush2.bf16.msra.mxu0 %v1005
    %1356 = vmatprep.subr.bf16.mxu0 %v1002
    %1357 = vmatpush2.bf16.msra.mxu0 %v1001
    %1358 = vmatprep.subr.bf16.mxu0 %v998
    %1359 = vmatpush2.bf16.msra.mxu0 %v997
    %1360 = vmatprep.mubr.bf16.mxu0 %v316
    %1361 = vmatmul.mubr.bf16.gmra.mxu0 %v315
    %v1362 = vpop.f32.mrf.mxu0
    %v1363 = vadd.f32 %v1320, %v1362
    %v1364 = vpop.f32.mrf.mxu0
    %v1365 = vadd.f32 %v1322, %v1364
    %v1366 = vpop.f32.mrf.mxu0
    %v1367 = vadd.f32 %v1324, %v1366
    %v1368 = vpop.f32.mrf.mxu0
    %v1369 = vadd.f32 %v1326, %v1368
    %1370 = vdwg.mxu0
    %1371 = vmatprep.subr.bf16.mxu0 %v1058
    %1372 = vmatpush1.bf16.msra.mxu0 %v1057
    %1373 = vmatprep.subr.bf16.mxu0 %v1054
    %1374 = vmatpush1.bf16.msra.mxu0 %v1053
    %1375 = vmatprep.subr.bf16.mxu0 %v1050
    %1376 = vmatpush1.bf16.msra.mxu0 %v1049
    %1377 = vmatprep.subr.bf16.mxu0 %v1046
    %1378 = vmatpush1.bf16.msra.mxu0 %v1045
    %1379 = vmatprep.subr.bf16.mxu0 %v1042
    %1380 = vmatpush1.bf16.msra.mxu0 %v1041
    %1381 = vmatprep.subr.bf16.mxu0 %v1038
    %1382 = vmatpush1.bf16.msra.mxu0 %v1037
    %1383 = vmatprep.subr.bf16.mxu0 %v1034
    %1384 = vmatpush1.bf16.msra.mxu0 %v1033
    %1385 = vmatprep.subr.bf16.mxu0 %v1030
    %1386 = vmatpush1.bf16.msra.mxu0 %v1029
    %1387 = vmatprep.subr.bf16.mxu0 %v1090
    %1388 = vmatpush2.bf16.msra.mxu0 %v1089
    %1389 = vmatprep.subr.bf16.mxu0 %v1086
    %1390 = vmatpush2.bf16.msra.mxu0 %v1085
    %1391 = vmatprep.subr.bf16.mxu0 %v1082
    %1392 = vmatpush2.bf16.msra.mxu0 %v1081
    %1393 = vmatprep.subr.bf16.mxu0 %v1078
    %1394 = vmatpush2.bf16.msra.mxu0 %v1077
    %1395 = vmatprep.subr.bf16.mxu0 %v1074
    %1396 = vmatpush2.bf16.msra.mxu0 %v1073
    %1397 = vmatprep.subr.bf16.mxu0 %v1070
    %1398 = vmatpush2.bf16.msra.mxu0 %v1069
    %1399 = vmatprep.subr.bf16.mxu0 %v1066
    %1400 = vmatpush2.bf16.msra.mxu0 %v1065
    %1401 = vmatprep.subr.bf16.mxu0 %v1062
    %1402 = vmatpush2.bf16.msra.mxu0 %v1061
    %1403 = vmatprep.mubr.bf16.mxu0 %v318
    %1404 = vmatmul.mubr.bf16.gmra.mxu0 %v317
    %v1405 = vpop.f32.mrf.mxu0
    %v1406 = vadd.f32 %v1363, %v1405
    %v1407 = vpop.f32.mrf.mxu0
    %v1408 = vadd.f32 %v1365, %v1407
    %v1409 = vpop.f32.mrf.mxu0
    %v1410 = vadd.f32 %v1367, %v1409
    %v1411 = vpop.f32.mrf.mxu0
    %v1412 = vadd.f32 %v1369, %v1411
    %1413 = vdwg.mxu0
    %1414 = vmatprep.subr.bf16.mxu0 %v932
    %1415 = vmatpush1.bf16.msra.mxu0 %v931
    %1416 = vmatprep.subr.bf16.mxu0 %v928
    %1417 = vmatpush1.bf16.msra.mxu0 %v927
    %1418 = vmatprep.subr.bf16.mxu0 %v924
    %1419 = vmatpush1.bf16.msra.mxu0 %v923
    %1420 = vmatprep.subr.bf16.mxu0 %v920
    %1421 = vmatpush1.bf16.msra.mxu0 %v919
    %1422 = vmatprep.subr.bf16.mxu0 %v916
    %1423 = vmatpush1.bf16.msra.mxu0 %v915
    %1424 = vmatprep.subr.bf16.mxu0 %v912
    %1425 = vmatpush1.bf16.msra.mxu0 %v911
    %1426 = vmatprep.subr.bf16.mxu0 %v908
    %1427 = vmatpush1.bf16.msra.mxu0 %v907
    %1428 = vmatprep.subr.bf16.mxu0 %v904
    %1429 = vmatpush1.bf16.msra.mxu0 %v903
    %1430 = vmatprep.subr.bf16.mxu0 %v964
    %1431 = vmatpush2.bf16.msra.mxu0 %v963
    %1432 = vmatprep.subr.bf16.mxu0 %v960
    %1433 = vmatpush2.bf16.msra.mxu0 %v959
    %1434 = vmatprep.subr.bf16.mxu0 %v956
    %1435 = vmatpush2.bf16.msra.mxu0 %v955
    %1436 = vmatprep.subr.bf16.mxu0 %v952
    %1437 = vmatpush2.bf16.msra.mxu0 %v951
    %1438 = vmatprep.subr.bf16.mxu0 %v948
    %1439 = vmatpush2.bf16.msra.mxu0 %v947
    %1440 = vmatprep.subr.bf16.mxu0 %v944
    %1441 = vmatpush2.bf16.msra.mxu0 %v943
    %1442 = vmatprep.subr.bf16.mxu0 %v940
    %1443 = vmatpush2.bf16.msra.mxu0 %v939
    %1444 = vmatprep.subr.bf16.mxu0 %v936
    %1445 = vmatpush2.bf16.msra.mxu0 %v935
    %1446 = vmatprep.mubr.bf16.mxu0 %v314
    %1447 = vmatmul.mubr.bf16.gmra.mxu0 %v313
    %v1448 = vpop.f32.mrf.mxu0
    %v1449 = vadd.f32 %v286, %v1448
    %v1450 = vpop.f32.mrf.mxu0
    %v1451 = vadd.f32 %v290, %v1450
    %v1452 = vpop.f32.mrf.mxu0
    %v1453 = vadd.f32 %v286, %v1452
    %v1454 = vpop.f32.mrf.mxu0
    %v1455 = vadd.f32 %v290, %v1454
    %1456 = vdwg.mxu0
    %1457 = vmatprep.subr.bf16.mxu0 %v996
    %1458 = vmatpush1.bf16.msra.mxu0 %v995
    %1459 = vmatprep.subr.bf16.mxu0 %v992
    %1460 = vmatpush1.bf16.msra.mxu0 %v991
    %1461 = vmatprep.subr.bf16.mxu0 %v988
    %1462 = vmatpush1.bf16.msra.mxu0 %v987
    %1463 = vmatprep.subr.bf16.mxu0 %v984
    %1464 = vmatpush1.bf16.msra.mxu0 %v983
    %1465 = vmatprep.subr.bf16.mxu0 %v980
    %1466 = vmatpush1.bf16.msra.mxu0 %v979
    %1467 = vmatprep.subr.bf16.mxu0 %v976
    %1468 = vmatpush1.bf16.msra.mxu0 %v975
    %1469 = vmatprep.subr.bf16.mxu0 %v972
    %1470 = vmatpush1.bf16.msra.mxu0 %v971
    %1471 = vmatprep.subr.bf16.mxu0 %v968
    %1472 = vmatpush1.bf16.msra.mxu0 %v967
    %1473 = vmatprep.subr.bf16.mxu0 %v1028
    %1474 = vmatpush2.bf16.msra.mxu0 %v1027
    %1475 = vmatprep.subr.bf16.mxu0 %v1024
    %1476 = vmatpush2.bf16.msra.mxu0 %v1023
    %1477 = vmatprep.subr.bf16.mxu0 %v1020
    %1478 = vmatpush2.bf16.msra.mxu0 %v1019
    %1479 = vmatprep.subr.bf16.mxu0 %v1016
    %1480 = vmatpush2.bf16.msra.mxu0 %v1015
    %1481 = vmatprep.subr.bf16.mxu0 %v1012
    %1482 = vmatpush2.bf16.msra.mxu0 %v1011
    %1483 = vmatprep.subr.bf16.mxu0 %v1008
    %1484 = vmatpush2.bf16.msra.mxu0 %v1007
    %1485 = vmatprep.subr.bf16.mxu0 %v1004
    %1486 = vmatpush2.bf16.msra.mxu0 %v1003
    %1487 = vmatprep.subr.bf16.mxu0 %v1000
    %1488 = vmatpush2.bf16.msra.mxu0 %v999
    %1489 = vmatprep.mubr.bf16.mxu0 %v316
    %1490 = vmatmul.mubr.bf16.gmra.mxu0 %v315
    %v1491 = vpop.f32.mrf.mxu0
    %v1492 = vadd.f32 %v1449, %v1491
    %v1493 = vpop.f32.mrf.mxu0
    %v1494 = vadd.f32 %v1451, %v1493
    %v1495 = vpop.f32.mrf.mxu0
    %v1496 = vadd.f32 %v1453, %v1495
    %v1497 = vpop.f32.mrf.mxu0
    %v1498 = vadd.f32 %v1455, %v1497
    %1499 = vdwg.mxu0
    %1500 = vmatprep.subr.bf16.mxu0 %v1060
    %1501 = vmatpush1.bf16.msra.mxu0 %v1059
    %1502 = vmatprep.subr.bf16.mxu0 %v1056
    %1503 = vmatpush1.bf16.msra.mxu0 %v1055
    %1504 = vmatprep.subr.bf16.mxu0 %v1052
    %1505 = vmatpush1.bf16.msra.mxu0 %v1051
    %1506 = vmatprep.subr.bf16.mxu0 %v1048
    %1507 = vmatpush1.bf16.msra.mxu0 %v1047
    %1508 = vmatprep.subr.bf16.mxu0 %v1044
    %1509 = vmatpush1.bf16.msra.mxu0 %v1043
    %1510 = vmatprep.subr.bf16.mxu0 %v1040
    %1511 = vmatpush1.bf16.msra.mxu0 %v1039
    %1512 = vmatprep.subr.bf16.mxu0 %v1036
    %1513 = vmatpush1.bf16.msra.mxu0 %v1035
    %1514 = vmatprep.subr.bf16.mxu0 %v1032
    %1515 = vmatpush1.bf16.msra.mxu0 %v1031
    %1516 = vmatprep.subr.bf16.mxu0 %v1092
    %1517 = vmatpush2.bf16.msra.mxu0 %v1091
    %1518 = vmatprep.subr.bf16.mxu0 %v1088
    %1519 = vmatpush2.bf16.msra.mxu0 %v1087
    %1520 = vmatprep.subr.bf16.mxu0 %v1084
    %1521 = vmatpush2.bf16.msra.mxu0 %v1083
    %1522 = vmatprep.subr.bf16.mxu0 %v1080
    %1523 = vmatpush2.bf16.msra.mxu0 %v1079
    %1524 = vmatprep.subr.bf16.mxu0 %v1076
    %1525 = vmatpush2.bf16.msra.mxu0 %v1075
    %1526 = vmatprep.subr.bf16.mxu0 %v1072
    %1527 = vmatpush2.bf16.msra.mxu0 %v1071
    %1528 = vmatprep.subr.bf16.mxu0 %v1068
    %1529 = vmatpush2.bf16.msra.mxu0 %v1067
    %1530 = vmatprep.subr.bf16.mxu0 %v1064
    %1531 = vmatpush2.bf16.msra.mxu0 %v1063
    %1532 = vmatprep.mubr.bf16.mxu0 %v318
    %1533 = vmatmul.mubr.bf16.gmra.mxu0 %v317
    %v1534 = vpop.f32.mrf.mxu0
    %v1535 = vadd.f32 %v1492, %v1534
    %v1536 = vpop.f32.mrf.mxu0
    %v1537 = vadd.f32 %v1494, %v1536
    %v1538 = vpop.f32.mrf.mxu0
    %v1539 = vadd.f32 %v1496, %v1538
    %v1540 = vpop.f32.mrf.mxu0
    %v1541 = vadd.f32 %v1498, %v1540
    %1542 = vdwg.mxu0
    %v1543 = vxor.u32 %v1406, 2147483648
    %v1544 = vxor.u32 %v1408, 2147483648
    %v1545 = vxor.u32 %v1535, 2147483648
    %v1546 = vxor.u32 %v1537, 2147483648
    %v1547 = vxor.u32 %v1410, 2147483648
    %v1548 = vxor.u32 %v1412, 2147483648
    %v1549 = vxor.u32 %v1539, 2147483648
    %v1550 = vxor.u32 %v1541, 2147483648
    %v1551 = vmul.f32 %v1543, 1.442695
    %v1552 = vpow.pop %v1551
    %v1553 = vmul.f32 %v1544, 1.442695
    %v1554 = vpow.pop %v1553
    %v1555 = vmul.f32 %v1545, 1.442695
    %v1556 = vpow.pop %v1555
    %v1557 = vmul.f32 %v1546, 1.442695
    %v1558 = vpow.pop %v1557
    %v1559 = vmul.f32 %v1547, 1.442695
    %v1560 = vpow.pop %v1559
    %v1561 = vmul.f32 %v1548, 1.442695
    %v1562 = vpow.pop %v1561
    %v1563 = vmul.f32 %v1549, 1.442695
    %v1564 = vpow.pop %v1563
    %v1565 = vmul.f32 %v1550, 1.442695
    %v1566 = vpow.pop %v1565
    %v1567 = vadd.f32 %v1552, 1.0
    %v1568 = vadd.f32 %v1554, 1.0
    %v1569 = vadd.f32 %v1556, 1.0
    %v1570 = vadd.f32 %v1558, 1.0
    %v1571 = vadd.f32 %v1560, 1.0
    %v1572 = vadd.f32 %v1562, 1.0
    %v1573 = vadd.f32 %v1564, 1.0
    %v1574 = vadd.f32 %v1566, 1.0
    %v1575 = vrcp.pop %v1567
    %v1576 = vmul.f32 1.0, %v1575
    %v1577 = vrcp.pop %v1568
    %v1578 = vmul.f32 1.0, %v1577
    %v1579 = vrcp.pop %v1569
    %v1580 = vmul.f32 1.0, %v1579
    %v1581 = vrcp.pop %v1570
    %v1582 = vmul.f32 1.0, %v1581
    %v1583 = vrcp.pop %v1571
    %v1584 = vmul.f32 1.0, %v1583
    %v1585 = vrcp.pop %v1572
    %v1586 = vmul.f32 1.0, %v1585
    %v1587 = vrcp.pop %v1573
    %v1588 = vmul.f32 1.0, %v1587
    %v1589 = vrcp.pop %v1574
    %v1590 = vmul.f32 1.0, %v1589
    %v1591 = vpack.c.bf16 %v1584, %v1576
    %v1592 = vpack.c.bf16 %v1586, %v1578
    %v1593 = vpack.c.bf16 %v1588, %v1580
    %v1594 = vpack.c.bf16 %v1590, %v1582
    %v1595 = vld [vmem:[#allocation8] sm:$0xf]
    %v1596 = vld [vmem:[#allocation8 + $0x4] sm:$0xf]
    %v1597 = vld [vmem:[#allocation8 + $0x8] sm:$0xf]
    %v1598 = vld [vmem:[#allocation8 + $0xc] sm:$0xf]
    %v1599 = vld [vmem:[#allocation8 + $0x10] sm:$0xf]
    %v1600 = vld [vmem:[#allocation8 + $0x14] sm:$0xf]
    %v1601 = vld [vmem:[#allocation8 + $0x18] sm:$0xf]
    %v1602 = vld [vmem:[#allocation8 + $0x1c] sm:$0xf]
    %v1603 = vld [vmem:[#allocation8 + $0x20] sm:$0xf]
    %v1604 = vld [vmem:[#allocation8 + $0x24] sm:$0xf]
    %v1605 = vld [vmem:[#allocation8 + $0x28] sm:$0xf]
    %v1606 = vld [vmem:[#allocation8 + $0x2c] sm:$0xf]
    %v1607 = vld [vmem:[#allocation8 + $0x30] sm:$0xf]
    %v1608 = vld [vmem:[#allocation8 + $0x34] sm:$0xf]
    %v1609 = vld [vmem:[#allocation8 + $0x38] sm:$0xf]
    %v1610 = vld [vmem:[#allocation8 + $0x3c] sm:$0xf]
    %v1611 = vld [vmem:[#allocation8 + $0x40] sm:$0xf]
    %v1612 = vld [vmem:[#allocation8 + $0x44] sm:$0xf]
    %v1613 = vld [vmem:[#allocation8 + $0x48] sm:$0xf]
    %v1614 = vld [vmem:[#allocation8 + $0x4c] sm:$0xf]
    %v1615 = vld [vmem:[#allocation8 + $0x50] sm:$0xf]
    %v1616 = vld [vmem:[#allocation8 + $0x54] sm:$0xf]
    %v1617 = vld [vmem:[#allocation8 + $0x58] sm:$0xf]
    %v1618 = vld [vmem:[#allocation8 + $0x5c] sm:$0xf]
    %v1619 = vld [vmem:[#allocation8 + $0x60] sm:$0xf]
    %v1620 = vld [vmem:[#allocation8 + $0x64] sm:$0xf]
    %v1621 = vld [vmem:[#allocation8 + $0x68] sm:$0xf]
    %v1622 = vld [vmem:[#allocation8 + $0x6c] sm:$0xf]
    %v1623 = vld [vmem:[#allocation8 + $0x70] sm:$0xf]
    %v1624 = vld [vmem:[#allocation8 + $0x74] sm:$0xf]
    %v1625 = vld [vmem:[#allocation8 + $0x78] sm:$0xf]
    %v1626 = vld [vmem:[#allocation8 + $0x7c] sm:$0xf]
    %v1627 = vld [vmem:[#allocation8 + $0x80] sm:$0xf]
    %v1628 = vld [vmem:[#allocation8 + $0x84] sm:$0xf]
    %v1629 = vld [vmem:[#allocation8 + $0x88] sm:$0xf]
    %v1630 = vld [vmem:[#allocation8 + $0x8c] sm:$0xf]
    %v1631 = vld [vmem:[#allocation8 + $0x90] sm:$0xf]
    %v1632 = vld [vmem:[#allocation8 + $0x94] sm:$0xf]
    %v1633 = vld [vmem:[#allocation8 + $0x98] sm:$0xf]
    %v1634 = vld [vmem:[#allocation8 + $0x9c] sm:$0xf]
    %v1635 = vld [vmem:[#allocation8 + $0xa0] sm:$0xf]
    %v1636 = vld [vmem:[#allocation8 + $0xa4] sm:$0xf]
    %v1637 = vld [vmem:[#allocation8 + $0xa8] sm:$0xf]
    %v1638 = vld [vmem:[#allocation8 + $0xac] sm:$0xf]
    %v1639 = vld [vmem:[#allocation8 + $0xb0] sm:$0xf]
    %v1640 = vld [vmem:[#allocation8 + $0xb4] sm:$0xf]
    %v1641 = vld [vmem:[#allocation8 + $0xb8] sm:$0xf]
    %v1642 = vld [vmem:[#allocation8 + $0xbc] sm:$0xf]
    %v1643 = vld [vmem:[#allocation8 + $0xc0] sm:$0xf]
    %v1644 = vld [vmem:[#allocation8 + $0xc4] sm:$0xf]
    %v1645 = vld [vmem:[#allocation8 + $0xc8] sm:$0xf]
    %v1646 = vld [vmem:[#allocation8 + $0xcc] sm:$0xf]
    %v1647 = vld [vmem:[#allocation8 + $0xd0] sm:$0xf]
    %v1648 = vld [vmem:[#allocation8 + $0xd4] sm:$0xf]
    %v1649 = vld [vmem:[#allocation8 + $0xd8] sm:$0xf]
    %v1650 = vld [vmem:[#allocation8 + $0xdc] sm:$0xf]
    %v1651 = vld [vmem:[#allocation8 + $0xe0] sm:$0xf]
    %v1652 = vld [vmem:[#allocation8 + $0xe4] sm:$0xf]
    %v1653 = vld [vmem:[#allocation8 + $0xe8] sm:$0xf]
    %v1654 = vld [vmem:[#allocation8 + $0xec] sm:$0xf]
    %v1655 = vld [vmem:[#allocation8 + $0xf0] sm:$0xf]
    %v1656 = vld [vmem:[#allocation8 + $0xf4] sm:$0xf]
    %v1657 = vld [vmem:[#allocation8 + $0xf8] sm:$0xf]
    %v1658 = vld [vmem:[#allocation8 + $0xfc] sm:$0xf]
    %v1659 = vld [vmem:[%s4] sm:$0x1]
    %v1661 = vlaneseq
    %v1662 = vshrl.u32 %v1661, 7
    %v1663 = vsub.s32 0, %v1662
    %v1664 = vrot.slane %v1659, %v1663
    %v1730 = vunpack.c.l.b16 %v1595
    %v1731 = vunpack.c.l.b16 %v1596
    %v1732 = vunpack.c.l.b16 %v1597
    %v1733 = vunpack.c.l.b16 %v1598
    %v1734 = vunpack.c.l.b16 %v1599
    %v1735 = vunpack.c.l.b16 %v1600
    %v1736 = vunpack.c.l.b16 %v1601
    %v1737 = vunpack.c.l.b16 %v1602
    %v1738 = vunpack.c.l.b16 %v1603
    %v1739 = vunpack.c.l.b16 %v1604
    %v1740 = vunpack.c.l.b16 %v1605
    %v1741 = vunpack.c.l.b16 %v1606
    %v1742 = vunpack.c.l.b16 %v1607
    %v1743 = vunpack.c.l.b16 %v1608
    %v1744 = vunpack.c.l.b16 %v1609
    %v1745 = vunpack.c.l.b16 %v1610
    %v1746 = vunpack.c.l.b16 %v1611
    %v1747 = vunpack.c.l.b16 %v1612
    %v1748 = vunpack.c.l.b16 %v1613
    %v1749 = vunpack.c.l.b16 %v1614
    %v1750 = vunpack.c.l.b16 %v1615
    %v1751 = vunpack.c.l.b16 %v1616
    %v1752 = vunpack.c.l.b16 %v1617
    %v1753 = vunpack.c.l.b16 %v1618
    %v1754 = vunpack.c.l.b16 %v1619
    %v1755 = vunpack.c.l.b16 %v1620
    %v1756 = vunpack.c.l.b16 %v1621
    %v1757 = vunpack.c.l.b16 %v1622
    %v1758 = vunpack.c.l.b16 %v1623
    %v1759 = vunpack.c.l.b16 %v1624
    %v1760 = vunpack.c.l.b16 %v1625
    %v1761 = vunpack.c.l.b16 %v1626
    %v1762 = vunpack.c.l.b16 %v1627
    %v1763 = vunpack.c.l.b16 %v1628
    %v1764 = vunpack.c.l.b16 %v1629
    %v1765 = vunpack.c.l.b16 %v1630
    %v1766 = vunpack.c.l.b16 %v1631
    %v1767 = vunpack.c.l.b16 %v1632
    %v1768 = vunpack.c.l.b16 %v1633
    %v1769 = vunpack.c.l.b16 %v1634
    %v1770 = vunpack.c.l.b16 %v1635
    %v1771 = vunpack.c.l.b16 %v1636
    %v1772 = vunpack.c.l.b16 %v1637
    %v1773 = vunpack.c.l.b16 %v1638
    %v1774 = vunpack.c.l.b16 %v1639
    %v1775 = vunpack.c.l.b16 %v1640
    %v1776 = vunpack.c.l.b16 %v1641
    %v1777 = vunpack.c.l.b16 %v1642
    %v1778 = vunpack.c.l.b16 %v1643
    %v1779 = vunpack.c.l.b16 %v1644
    %v1780 = vunpack.c.l.b16 %v1645
    %v1781 = vunpack.c.l.b16 %v1646
    %v1782 = vunpack.c.l.b16 %v1647
    %v1783 = vunpack.c.l.b16 %v1648
    %v1784 = vunpack.c.l.b16 %v1649
    %v1785 = vunpack.c.l.b16 %v1650
    %v1786 = vunpack.c.l.b16 %v1651
    %v1787 = vunpack.c.l.b16 %v1652
    %v1788 = vunpack.c.l.b16 %v1653
    %v1789 = vunpack.c.l.b16 %v1654
    %v1790 = vunpack.c.l.b16 %v1655
    %v1791 = vunpack.c.l.b16 %v1656
    %v1792 = vunpack.c.l.b16 %v1657
    %v1793 = vunpack.c.l.b16 %v1658
    %v1794 = vpack.c.b16 %v1731, %v1730
    %v1795 = vpack.c.b16 %v1733, %v1732
    %v1796 = vpack.c.b16 %v1735, %v1734
    %v1797 = vpack.c.b16 %v1737, %v1736
    %v1798 = vpack.c.b16 %v1739, %v1738
    %v1799 = vpack.c.b16 %v1741, %v1740
    %v1800 = vpack.c.b16 %v1743, %v1742
    %v1801 = vpack.c.b16 %v1745, %v1744
    %v1802 = vpack.c.b16 %v1747, %v1746
    %v1803 = vpack.c.b16 %v1749, %v1748
    %v1804 = vpack.c.b16 %v1751, %v1750
    %v1805 = vpack.c.b16 %v1753, %v1752
    %v1806 = vpack.c.b16 %v1755, %v1754
    %v1807 = vpack.c.b16 %v1757, %v1756
    %v1808 = vpack.c.b16 %v1759, %v1758
    %v1809 = vpack.c.b16 %v1761, %v1760
    %v1810 = vpack.c.b16 %v1763, %v1762
    %v1811 = vpack.c.b16 %v1765, %v1764
    %v1812 = vpack.c.b16 %v1767, %v1766
    %v1813 = vpack.c.b16 %v1769, %v1768
    %v1814 = vpack.c.b16 %v1771, %v1770
    %v1815 = vpack.c.b16 %v1773, %v1772
    %v1816 = vpack.c.b16 %v1775, %v1774
    %v1817 = vpack.c.b16 %v1777, %v1776
    %v1818 = vpack.c.b16 %v1779, %v1778
    %v1819 = vpack.c.b16 %v1781, %v1780
    %v1820 = vpack.c.b16 %v1783, %v1782
    %v1821 = vpack.c.b16 %v1785, %v1784
    %v1822 = vpack.c.b16 %v1787, %v1786
    %v1823 = vpack.c.b16 %v1789, %v1788
    %v1824 = vpack.c.b16 %v1791, %v1790
    %v1825 = vpack.c.b16 %v1793, %v1792
    %1858 = vmatprep.subr.bf16.mxu0 0
    %1859 = vmatpush1.bf16.msra.mxu0 %v1801
    %1860 = vmatprep.subr.bf16.mxu0 0
    %1861 = vmatpush1.bf16.msra.mxu0 %v1800
    %1862 = vmatprep.subr.bf16.mxu0 0
    %1863 = vmatpush1.bf16.msra.mxu0 %v1799
    %1864 = vmatprep.subr.bf16.mxu0 0
    %1865 = vmatpush1.bf16.msra.mxu0 %v1798
    %1866 = vmatprep.subr.bf16.mxu0 0
    %1867 = vmatpush1.bf16.msra.mxu0 %v1797
    %1868 = vmatprep.subr.bf16.mxu0 0
    %1869 = vmatpush1.bf16.msra.mxu0 %v1796
    %1870 = vmatprep.subr.bf16.mxu0 0
    %1871 = vmatpush1.bf16.msra.mxu0 %v1795
    %1872 = vmatprep.subr.bf16.mxu0 0
    %1873 = vmatpush1.bf16.msra.mxu0 %v1794
    %1874 = vmatprep.subr.bf16.mxu0 0
    %1875 = vmatpush2.bf16.msra.mxu0 %v1809
    %1876 = vmatprep.subr.bf16.mxu0 0
    %1877 = vmatpush2.bf16.msra.mxu0 %v1808
    %1878 = vmatprep.subr.bf16.mxu0 0
    %1879 = vmatpush2.bf16.msra.mxu0 %v1807
    %1880 = vmatprep.subr.bf16.mxu0 0
    %1881 = vmatpush2.bf16.msra.mxu0 %v1806
    %1882 = vmatprep.subr.bf16.mxu0 0
    %1883 = vmatpush2.bf16.msra.mxu0 %v1805
    %1884 = vmatprep.subr.bf16.mxu0 0
    %1885 = vmatpush2.bf16.msra.mxu0 %v1804
    %1886 = vmatprep.subr.bf16.mxu0 0
    %1887 = vmatpush2.bf16.msra.mxu0 %v1803
    %1888 = vmatprep.subr.bf16.mxu0 0
    %1889 = vmatpush2.bf16.msra.mxu0 %v1802
    %1890 = vmatprep.mubr.bf16.mxu0 %v1592
    %1891 = vmatmul.mubr.bf16.gmra.mxu0 %v1591
    %v1892 = vpop.f32.mrf.mxu0
    %v1893 = vadd.f32 %v1664, %v1892
    %v1894 = vpop.f32.mrf.mxu0
    %v1895 = vpop.f32.mrf.mxu0
    %v1896 = vadd.f32 %v1664, %v1895
    %v1897 = vpop.f32.mrf.mxu0
    %1898 = vdwg.mxu0
    %1899 = vmatprep.subr.bf16.mxu0 0
    %1900 = vmatpush1.bf16.msra.mxu0 %v1817
    %1901 = vmatprep.subr.bf16.mxu0 0
    %1902 = vmatpush1.bf16.msra.mxu0 %v1816
    %1903 = vmatprep.subr.bf16.mxu0 0
    %1904 = vmatpush1.bf16.msra.mxu0 %v1815
    %1905 = vmatprep.subr.bf16.mxu0 0
    %1906 = vmatpush1.bf16.msra.mxu0 %v1814
    %1907 = vmatprep.subr.bf16.mxu0 0
    %1908 = vmatpush1.bf16.msra.mxu0 %v1813
    %1909 = vmatprep.subr.bf16.mxu0 0
    %1910 = vmatpush1.bf16.msra.mxu0 %v1812
    %1911 = vmatprep.subr.bf16.mxu0 0
    %1912 = vmatpush1.bf16.msra.mxu0 %v1811
    %1913 = vmatprep.subr.bf16.mxu0 0
    %1914 = vmatpush1.bf16.msra.mxu0 %v1810
    %1915 = vmatprep.subr.bf16.mxu0 0
    %1916 = vmatpush2.bf16.msra.mxu0 %v1825
    %1917 = vmatprep.subr.bf16.mxu0 0
    %1918 = vmatpush2.bf16.msra.mxu0 %v1824
    %1919 = vmatprep.subr.bf16.mxu0 0
    %1920 = vmatpush2.bf16.msra.mxu0 %v1823
    %1921 = vmatprep.subr.bf16.mxu0 0
    %1922 = vmatpush2.bf16.msra.mxu0 %v1822
    %1923 = vmatprep.subr.bf16.mxu0 0
    %1924 = vmatpush2.bf16.msra.mxu0 %v1821
    %1925 = vmatprep.subr.bf16.mxu0 0
    %1926 = vmatpush2.bf16.msra.mxu0 %v1820
    %1927 = vmatprep.subr.bf16.mxu0 0
    %1928 = vmatpush2.bf16.msra.mxu0 %v1819
    %1929 = vmatprep.subr.bf16.mxu0 0
    %1930 = vmatpush2.bf16.msra.mxu0 %v1818
    %1931 = vmatprep.mubr.bf16.mxu0 %v1594
    %1932 = vmatmul.mubr.bf16.gmra.mxu0 %v1593
    %v1933 = vpop.f32.mrf.mxu0
    %v1934 = vadd.f32 %v1893, %v1933
    %v1935 = vpop.f32.mrf.mxu0
    %v1936 = vpop.f32.mrf.mxu0
    %v1937 = vadd.f32 %v1896, %v1936
    %v1938 = vpop.f32.mrf.mxu0
    %1939 = vdwg.mxu0
    %v1940 = vxor.u32 %v1934, 2147483648
    %v1941 = vxor.u32 %v1937, 2147483648
    %v1942 = vmul.f32 %v1940, 1.442695
    %v1943 = vpow.pop %v1942
    %v1944 = vmul.f32 %v1941, 1.442695
    %v1945 = vpow.pop %v1944
    %v1946 = vadd.f32 %v1943, 1.0
    %v1947 = vadd.f32 %v1945, 1.0
    %v1948 = vrcp.pop %v1946
    %v1949 = vmul.f32 1.0, %v1948
    %v1950 = vrcp.pop %v1947
    %v1951 = vmul.f32 1.0, %v1950
    %v1952 = vmul.f32 %v1949, 255.0
    %v1953 = vmul.f32 %v1951, 255.0
    %1954 = vst [vmem:[#allocation10] sm:$0xff] %v1952
    %1955 = vst [vmem:[#allocation10 + $0x8] sm:$0xff] %v1953
    // Predicated region
    $region38: #{tpu_custom_call.1} parent=1 // pred_check
      _
    $region39: #{tpu_custom_call.1} parent=1 // pred_check_branch
      %1957 = sbr.rel (0) target = $region41
    $region40: #{tpu_custom_call.1} parent=1 // pred_region
      %s1959 = ssub.s32 256, 256
      %1960 = vsyncadd [#allocation4], %s1959
      %s1961 = sshll.u32 [#allocation10], 4
      %s1962 = int_to_ptr.vmem [resolvable:$true] %s1961
      %1967 = dma.vmem_to_hbm [thread:$0]  %s1962, 256, %s5, [#allocation4], 128, 128, 8
    $region41: #{tpu_custom_call.1} parent=1 // pred_fallthru
      _
    // Predicated region
    $region42: #{tpu_custom_call.1} parent=1 // pred_check
      _
    $region43: #{tpu_custom_call.1} parent=1 // pred_check_branch
      %1969 = sbr.rel (0) target = $region45
    $region44: #{tpu_custom_call.1} parent=1 // pred_region
      %1970 = dma.done [#allocation4], 256
    $region45: #{tpu_custom_call.1} parent=1 // pred_fallthru
      _
    %1971 = vsyncpa [#allocation3], 1
    %1972 = vsyncpa [#allocation6], 1
    %1973 = vsyncpa [#allocation9], 1
    %1974 = vsyncpa [#allocation4], 1

</llo_original>
